<compile_context>
chip_gen: v7x
topology: tpu7x:2x2x1
jax: 0.10.0
libtpu: 0.0.40
codegen_flags: <defaults>
</compile_context>

<pallas_src>
import numpy as np
import jax
import jax.numpy as jnp
from jax import lax
from jax.experimental import pallas as pl
from jax.experimental.pallas import tpu as pltpu


# ----------------------------------------------------------------------------
# Host-side setup: steady-state covariance (continuous algebraic Riccati eq.)
# TODO(synk): scipy.linalg.solve_continuous_are has no Pallas equivalent; it is
# solved host-side by integrating the Riccati ODE to steady state (pure numpy).
# ----------------------------------------------------------------------------
def _solve_care_steady_state(A, C, D, step=0.005, iters=40000):
    # dP/dt = A P + P A^T + D - P C^T C P   (R = I), integrate to fixed point.
    P = np.eye(2)
    CtC = C.T @ C
    for _ in range(iters):
        dP = A @ P + P @ A.T + D - P @ CtC @ P
        P = P + step * dP
    return P


# ----------------------------------------------------------------------------
# Pallas kernel: one chunk of CH = 8*W timesteps per grid step.
#   inputs : params (SMEM, 11 scalars), in block (24, W) = [dy0 | xi0 | xi1],
#            each an (8, W) sublane-packed time tile.
#   output : out block (40, W) = [x0 | x1 | dy_hat0 | f0 | f1] (8 rows each).
#   scratch: carry (VMEM (8,128)) holding the 2-vector state across chunks.
# ----------------------------------------------------------------------------
def grnn_scan_kernel(params_ref, in_ref, out_ref, carry_ref):
    W = in_ref.shape[1]                        # static lane width per segment
    CH = 8 * W                                 # timesteps per grid step

    dt = params_ref[0]
    a00 = params_ref[1]
    a01 = params_ref[2]
    a10 = params_ref[3]
    a11 = params_ref[4]
    c = params_ref[5]                          # sqrt(4 eta kappa)
    logkf = params_ref[6]                      # log1p(k0 * dt)
    f00 = params_ref[7]
    f01 = params_ref[8]

    ci = pl.program_id(0)

    # Initialize the cross-chunk carry (stored in lane 127 of rows 0/1).
    @pl.when(ci == 0)
    def _():
        carry_ref[0:1, :] = jnp.full((1, 128), params_ref[9], jnp.float32)
        carry_ref[1:2, :] = jnp.full((1, 128), params_ref[10], jnp.float32)

    cx0 = carry_ref[0:1, 127:128]              # (1, 1) chunk-entry state
    cx1 = carry_ref[1:2, 127:128]

    dy0 = in_ref[0:8, :]                       # (8, W) measurement increments
    xi0 = in_ref[8:16, :]                      # (8, W) prior Var[q] * c
    xi1 = in_ref[16:24, :]                     # (8, W) prior Cov(q,p) * c

    lane = lax.broadcasted_iota(jnp.int32, (8, W), 1)
    sub = lax.broadcasted_iota(jnp.int32, (8, W), 0)
    sub_col = lax.broadcasted_iota(jnp.int32, (8, 1), 0)

    # Global timestep index (0-based) of each (sublane, lane) slot.
    tg = (ci * CH + sub * W + lane).astype(jnp.float32)

    # Drive: f_{t+1} = f0 * (1 + k0 dt)^(t+1) = f0 * exp((t+1) * log1p(k0 dt)).
    # TODO(synk): assumes 1 + k0*dt > 0 (true for any sane dt).
    fscale = jnp.exp((tg + 1.0) * logkf)
    fn0 = f00 * fscale
    fn1 = f01 * fscale
    # Store data-independent outputs now to release vregs before the scan.
    out_ref[24:32, :] = fn0
    out_ref[32:40, :] = fn1

    # Per-step affine map  x_{t+1} = M_t x_t + b_t   (all VPU, (8, W) dense).
    m00 = (1.0 + dt * a00) - (dt * c) * xi0
    m01 = jnp.full((8, W), dt * a01, jnp.float32)
    m10 = dt * a10 - (dt * c) * xi1
    m11 = jnp.full((8, W), 1.0 + dt * a11, jnp.float32)
    b0 = xi0 * dy0 + fn0 * dt
    b1 = xi1 * dy0 + fn1 * dt

    def compose(c00, c01, c10, c11, cb0, cb1, p00, p01, p10, p11, pb0, pb1):
        # (cur) o (prev): prev applied first.
        n00 = c00 * p00 + c01 * p10
        n01 = c00 * p01 + c01 * p11
        n10 = c10 * p00 + c11 * p10
        n11 = c10 * p01 + c11 * p11
        nb0 = c00 * pb0 + c01 * pb1 + cb0
        nb1 = c10 * pb0 + c11 * pb1 + cb1
        return n00, n01, n10, n11, nb0, nb1

    # Phase 1: lane-axis Hillis-Steele prefix composition within each sublane
    # row (log2(W) unrolled steps; XLU roll + one VPU select per operand).
    s = 1
    while s < W:
        cond = lane < s
        rm00 = jnp.where(cond, 1.0, pltpu.roll(m00, shift=s, axis=1))
        rm01 = jnp.where(cond, 0.0, pltpu.roll(m01, shift=s, axis=1))
        rm10 = jnp.where(cond, 0.0, pltpu.roll(m10, shift=s, axis=1))
        rm11 = jnp.where(cond, 1.0, pltpu.roll(m11, shift=s, axis=1))
        rb0 = jnp.where(cond, 0.0, pltpu.roll(b0, shift=s, axis=1))
        rb1 = jnp.where(cond, 0.0, pltpu.roll(b1, shift=s, axis=1))
        m00, m01, m10, m11, b0, b1 = compose(
            m00, m01, m10, m11, b0, b1, rm00, rm01, rm10, rm11, rb0, rb1)
        s *= 2

    # Phase 2: stitch the 8 sublane segments (3 steps).  The shifted operand is
    # the composed full-segment map of the row `s` above, broadcast from its
    # last lane (identity fill for the first s rows).
    for s in (1, 2, 4):
        def rshift(x, fillv, s=s):
            col = pltpu.roll(x, shift=s, axis=0)[:, W - 1:W]   # (8, 1)
            return jnp.where(sub_col < s, fillv, col)
        rm00 = rshift(m00, 1.0)
        rm01 = rshift(m01, 0.0)
        rm10 = rshift(m10, 0.0)
        rm11 = rshift(m11, 1.0)
        rb0 = rshift(b0, 0.0)
        rb1 = rshift(b1, 0.0)
        m00, m01, m10, m11, b0, b1 = compose(
            m00, m01, m10, m11, b0, b1, rm00, rm01, rm10, rm11, rb0, rb1)

    # Apply the composed prefix maps to the chunk-entry state: slot (r, j)
    # holds x_{t+1} for t = ci*CH + r*W + j.
    x0 = m00 * cx0 + m01 * cx1 + b0
    x1 = m10 * cx0 + m11 * cx1 + b1

    # Predicted measurement increment uses the *prior* state x_t: shift x0 back
    # by one timestep in the flattened (sublane-major) order.
    xl = pltpu.roll(x0, shift=1, axis=1)               # (r, j) <- (r, j-1)
    xr = pltpu.roll(xl, shift=1, axis=0)               # (r, 0) <- (r-1, W-1)
    prev_x0 = jnp.where(lane == 0, xr, xl)
    prev_x0 = jnp.where((lane == 0) & (sub == 0), cx0, prev_x0)

    # Packed, sublane-aligned output stores.
    out_ref[0:8, :] = x0
    out_ref[8:16, :] = x1
    out_ref[16:24, :] = (c * dt) * prev_x0

    # Carry the final state of this chunk (row 7, lane W-1) to the next step.
    carry_ref[0:1, :] = x0[7:8, W - 128:W]
    carry_ref[1:2, :] = x1[7:8, W - 128:W]


# ----------------------------------------------------------------------------
# Wrapper: CARE solve + host-side Riccati prior/posterior pass + pallas_call +
# layout plumbing back to the PyTorch module's output shapes.
# ----------------------------------------------------------------------------
def recurrent_network_forward(dys, dt, simulation_params, kernel_param0, f0,
                              lane_width=None):
    gamma, omega, n, eta, kappa, b = simulation_params
    c = float(np.sqrt(4.0 * eta * kappa))
    d = float(gamma * (n + 0.5) + kappa)
    a00, a01, a10, a11 = -gamma / 2.0, omega, -omega, -gamma / 2.0

    A = np.array([[a00, a01], [a10, a11]])
    Cmat = c * np.array([[1.0, 0.0], [0.0, 0.0]])
    Dmat = np.diag([d, d])
    Cov0 = _solve_care_steady_state(A, Cmat, Dmat)

    T = int(dys.shape[0])
    dys = jnp.asarray(dys, jnp.float32)
    f0 = jnp.asarray(f0, jnp.float32).reshape(2)

    # Data-independent prior/posterior covariance (Riccati) pass — host-side.
    # TODO(synk): inherently sequential; depends only on static scalars so it is
    # precomputed in numpy (off the device critical path) instead of in-kernel.
    dtf = np.float32(dt)
    cf = np.float32(c)
    dcf = np.float32(d)
    a00f, a01f = np.float32(a00), np.float32(a01)
    a10f, a11f = np.float32(a10), np.float32(a11)
    two = np.float32(2.0)
    vx = np.float32(Cov0[0, 0])
    vp = np.float32(Cov0[1, 1])
    cxp = np.float32(Cov0[1, 0])
    xi0_h = np.empty(T, np.float32)
    xi1_h = np.empty(T, np.float32)
    post_h = np.empty((T, 3), np.float32)
    for t in range(T):
        xi0 = vx * cf
        xi1 = cxp * cf
        xi0_h[t] = xi0
        xi1_h[t] = xi1
        nvx = vx + dtf * (two * (a00f * vx + a01f * cxp) + dcf - xi0 * xi0)
        ncxp = cxp + dtf * ((a00f * cxp + a01f * vp)
                            + (a10f * vx + a11f * cxp) - xi1 * xi0)
        nvp = vp + dtf * (two * (a10f * cxp + a11f * vp) + dcf - xi1 * xi1)
        post_h[t, 0] = nvx
        post_h[t, 1] = nvp
        post_h[t, 2] = ncxp
        vx, vp, cxp = nvx, nvp, ncxp

    # Chunk layout: 8 sublane time segments x W lanes per grid step.
    if lane_width is None:
        lane_width = 128 if T <= 1024 else 256
    W = int(lane_width)
    CH = 8 * W
    NC = max(1, -(-T // CH))
    TP = NC * CH

    def pack_host(v):            # (T,) numpy -> (NC, 8, W) constant, zero pad
        buf = np.zeros(TP, np.float32)
        buf[:T] = v
        return jnp.asarray(buf.reshape(NC, 8, W))

    dy0 = jnp.zeros((TP,), jnp.float32).at[:T].set(dys[:, 0]).reshape(NC, 8, W)
    inp = jnp.concatenate([dy0, pack_host(xi0_h), pack_host(xi1_h)], axis=1)
    inp = inp.reshape(NC * 24, W)

    k0 = float(kernel_param0)
    logkf = float(np.log1p(k0 * dt))
    params = jnp.concatenate([
        jnp.array([dt, a00, a01, a10, a11, c, logkf], jnp.float32),
        f0,
        jnp.zeros((2,), jnp.float32),     # module's initial state x = (0, 0)
    ])

    out = pl.pallas_call(
        grnn_scan_kernel,
        out_shape=jax.ShapeDtypeStruct((NC * 40, W), jnp.float32),
        grid_spec=pltpu.PrefetchScalarGridSpec(
            num_scalar_prefetch=0,
            grid=(NC,),
            in_specs=[
                pl.BlockSpec(memory_space=pltpu.MemorySpace.SMEM),   # params
                pl.BlockSpec((24, W), lambda i: (i, 0)),             # dy0|xi0|xi1
            ],
            out_specs=pl.BlockSpec((40, W), lambda i: (i, 0)),       # x0|x1|dyh|f0|f1
            scratch_shapes=[pltpu.VMEM((8, 128), jnp.float32)],      # carry
        ),
        # TODO(synk): the cross-chunk carry serializes the grid; a 3-phase
        # (reduce/combine/apply) restructure would allow "parallel" on v7x.
        compiler_params=pltpu.CompilerParams(
            dimension_semantics=("arbitrary",)),
    )(params, inp)

    outr = out.reshape(NC, 5, 8, W)
    x0_t = outr[:, 0].reshape(TP)[:T]
    x1_t = outr[:, 1].reshape(TP)[:T]
    dyh_t = outr[:, 2].reshape(TP)[:T]
    fn0_t = outr[:, 3].reshape(TP)[:T]
    fn1_t = outr[:, 4].reshape(TP)[:T]

    # Time column: sequential f32 accumulation matching the reference's t + dt.
    tcol = np.cumsum(np.full(T, dt, np.float32), dtype=np.float32)

    init_state = jnp.array([0.0, 0.0, Cov0[0, 0], Cov0[1, 1], Cov0[1, 0], 0.0],
                           dtype=jnp.float32)
    xs_hat = jnp.concatenate([
        init_state[None, :],
        jnp.stack([x0_t, x1_t,
                   jnp.asarray(post_h[:, 0]), jnp.asarray(post_h[:, 1]),
                   jnp.asarray(post_h[:, 2]), jnp.asarray(tcol)], axis=1),
    ], axis=0)
    dys_hat = jnp.stack([dyh_t, jnp.zeros((T,), jnp.float32)], axis=1)
    fs_hat = jnp.concatenate([f0[None, :], jnp.stack([fn0_t, fn1_t], axis=1)],
                             axis=0)
    return xs_hat, dys_hat, fs_hat


# ----------------------------------------------------------------------------
# Pure-numpy reference (mirrors the PyTorch forward exactly), for validation.
# ----------------------------------------------------------------------------
def reference_forward(dys, dt, simulation_params, kernel_param0, f0):
    gamma, omega, n, eta, kappa, b = simulation_params
    A = np.array([[-gamma / 2.0, omega], [-omega, -gamma / 2.0]], dtype=np.float32)
    C = (np.sqrt(4.0 * eta * kappa) *
         np.array([[1.0, 0.0], [0.0, 0.0]])).astype(np.float32)
    D = ((gamma * (n + 0.5) + kappa) * np.eye(2)).astype(np.float32)
    Cov0 = _solve_care_steady_state(
        np.array([[-gamma / 2.0, omega], [-omega, -gamma / 2.0]]),
        np.sqrt(4.0 * eta * kappa) * np.array([[1.0, 0.0], [0.0, 0.0]]),
        np.diag([gamma * (n + 0.5) + kappa] * 2))
    dt = np.float32(dt)
    k0 = np.float32(kernel_param0)

    state = np.array([0.0, 0.0, Cov0[0, 0], Cov0[1, 1], Cov0[1, 0], 0.0],
                     dtype=np.float32)
    f = np.asarray(f0, dtype=np.float32)
    xs, dyhs, fs = [state.copy()], [], [f.copy()]
    for dy in np.asarray(dys, dtype=np.float32):
        x = state[:2]
        vx, vp, cxp = state[2], state[3], state[4]
        t = state[-1]
        cov = np.array([[vx, cxp], [cxp, vp]], dtype=np.float32)
        xicov = cov @ C.T
        dx = (A - xicov @ C) @ x * dt + xicov @ dy
        fnew = f + k0 * f * dt
        dx = dx + fnew * dt
        dcov = dt * (cov @ A.T + A @ cov + D - xicov @ xicov.T)
        ncov = cov + dcov
        dy_hat = C @ x * dt
        state = np.concatenate(
            [x + dx,
             np.array([ncov[0, 0], ncov[1, 1], ncov[1, 0]], dtype=np.float32),
             np.array([t + dt], dtype=np.float32)]).astype(np.float32)
        f = fnew
        xs.append(state.copy())
        dyhs.append(dy_hat.astype(np.float32))
        fs.append(f.copy())
    return np.stack(xs), np.stack(dyhs), np.stack(fs)


if __name__ == "__main__":
    # inputs_cell analogue: dt, simulation_params, trainable_params
    dt = 1e-3
    simulation_params = (0.3, 2.0 * np.pi * 1.0, 2.0, 0.8, 0.5, 0.0)  # gamma, omega, n, eta, kappa, b
    initial_state_f = np.array([0.1, -0.05], dtype=np.float32)        # trainable_params[0]
    kernel_param0 = -0.2                                              # trainable_params[1]

    # Small test (single chunk, 8 x 128 layout).
    T = 8
    key = jax.random.PRNGKey(0)
    dys = 0.05 * jax.random.normal(key, (T, 2), dtype=jnp.float32)

    xs_hat, dys_hat, fs_hat = recurrent_network_forward(
        dys, dt, simulation_params, kernel_param0, initial_state_f)
    jax.block_until_ready((xs_hat, dys_hat, fs_hat))

    xs_r, dyh_r, fs_r = reference_forward(
        np.asarray(dys), dt, simulation_params, kernel_param0, initial_state_f)

    assert xs_hat.shape == (T + 1, 6)
    assert dys_hat.shape == (T, 2)
    assert fs_hat.shape == (T + 1, 2)
    assert np.allclose(np.asarray(xs_hat), xs_r, rtol=1e-4, atol=1e-5)
    assert np.allclose(np.asarray(dys_hat), dyh_r, rtol=1e-4, atol=1e-6)
    assert np.allclose(np.asarray(fs_hat), fs_r, rtol=1e-4, atol=1e-6)

    # Larger test exercising the multi-chunk carry path (W=256, CH=2048, grid=2).
    T2 = 3000
    dys2 = 0.05 * jax.random.normal(jax.random.PRNGKey(1), (T2, 2),
                                    dtype=jnp.float32)
    xs2, dyh2, fs2 = recurrent_network_forward(
        dys2, dt, simulation_params, kernel_param0, initial_state_f)
    jax.block_until_ready((xs2, dyh2, fs2))
    xs2_r, dyh2_r, fs2_r = reference_forward(
        np.asarray(dys2), dt, simulation_params, kernel_param0, initial_state_f)
    assert np.allclose(np.asarray(xs2), xs2_r, rtol=2e-3, atol=1e-4)
    assert np.allclose(np.asarray(dyh2), dyh2_r, rtol=2e-3, atol=1e-6)
    assert np.allclose(np.asarray(fs2), fs2_r, rtol=2e-3, atol=1e-6)

    print("KERNEL_OK")
</pallas_src>

<mosaic_0001>
module attributes {stable_mosaic.version = 11 : i64} {
  func.func @grnn_scan_kernel(%arg0: i32, %arg1: memref<11xf32, #tpu.memory_space<smem>>, %arg2: memref<24x128xf32, #tpu.memory_space<vmem>>, %arg3: memref<40x128xf32, #tpu.memory_space<vmem>>, %arg4: memref<8x128xf32, #tpu.memory_space<vmem>>) attributes {dimension_semantics = [#tpu.dimension_semantics<arbitrary>], iteration_bounds = array<i64: 1>, scalar_prefetch = 0 : i64, scratch_operands = 1 : i64, tpu.core_type = #tpu.core_type<tc>, window_params = [{transform_indices = @transform_0, window_bounds = array<i64: 11>}, {transform_indices = @transform_1, window_bounds = array<i64: 24, 128>}, {transform_indices = @transform_2, window_bounds = array<i64: 40, 128>}]} {
    %c0 = arith.constant 0 : index
    %0 = memref.load %arg1[%c0] : memref<11xf32, #tpu.memory_space<smem>>
    %c1 = arith.constant 1 : index
    %1 = memref.load %arg1[%c1] : memref<11xf32, #tpu.memory_space<smem>>
    %c2 = arith.constant 2 : index
    %2 = memref.load %arg1[%c2] : memref<11xf32, #tpu.memory_space<smem>>
    %c3 = arith.constant 3 : index
    %3 = memref.load %arg1[%c3] : memref<11xf32, #tpu.memory_space<smem>>
    %c4 = arith.constant 4 : index
    %4 = memref.load %arg1[%c4] : memref<11xf32, #tpu.memory_space<smem>>
    %c5 = arith.constant 5 : index
    %5 = memref.load %arg1[%c5] : memref<11xf32, #tpu.memory_space<smem>>
    %c6 = arith.constant 6 : index
    %6 = memref.load %arg1[%c6] : memref<11xf32, #tpu.memory_space<smem>>
    %c7 = arith.constant 7 : index
    %7 = memref.load %arg1[%c7] : memref<11xf32, #tpu.memory_space<smem>>
    %c8 = arith.constant 8 : index
    %8 = memref.load %arg1[%c8] : memref<11xf32, #tpu.memory_space<smem>>
    %c0_i32 = arith.constant 0 : i32
    %9 = arith.cmpi eq, %arg0, %c0_i32 : i32
    %10 = arith.extui %9 : i1 to i32
    %c0_i32_0 = arith.constant 0 : i32
    %11 = arith.cmpi ne, %10, %c0_i32_0 : i32
    scf.if %11 {
      %c9 = arith.constant 9 : index
      %583 = memref.load %arg1[%c9] : memref<11xf32, #tpu.memory_space<smem>>
      %584 = vector.broadcast %583 : f32 to vector<1x128xf32>
      %c0_166 = arith.constant 0 : index
      %c0_167 = arith.constant 0 : index
      %585 = vector.load %arg4[%c0_166, %c0_167] : memref<8x128xf32, #tpu.memory_space<vmem>>, vector<1x128xf32>
      tpu.vector_store %arg4[%c0_166, %c0_167], %584 {strides = array<i32>} : memref<8x128xf32, #tpu.memory_space<vmem>>, vector<1x128xf32>,
      %c10 = arith.constant 10 : index
      %586 = memref.load %arg1[%c10] : memref<11xf32, #tpu.memory_space<smem>>
      %587 = vector.broadcast %586 : f32 to vector<1x128xf32>
      %c1_168 = arith.constant 1 : index
      %c0_169 = arith.constant 0 : index
      %588 = vector.load %arg4[%c1_168, %c0_169] : memref<8x128xf32, #tpu.memory_space<vmem>>, vector<1x128xf32>
      tpu.vector_store %arg4[%c1_168, %c0_169], %587 {strides = array<i32>} : memref<8x128xf32, #tpu.memory_space<vmem>>, vector<1x128xf32>,
    } else {
    }
    %c0_1 = arith.constant 0 : index
    %c127 = arith.constant 127 : index
    %12 = vector.load %arg4[%c0_1, %c127] : memref<8x128xf32, #tpu.memory_space<vmem>>, vector<1x1xf32>
    %c1_2 = arith.constant 1 : index
    %c127_3 = arith.constant 127 : index
    %13 = vector.load %arg4[%c1_2, %c127_3] : memref<8x128xf32, #tpu.memory_space<vmem>>, vector<1x1xf32>
    %c0_4 = arith.constant 0 : index
    %c0_5 = arith.constant 0 : index
    %14 = vector.load %arg2[%c0_4, %c0_5] : memref<24x128xf32, #tpu.memory_space<vmem>>, vector<8x128xf32>
    %c8_6 = arith.constant 8 : index
    %c0_7 = arith.constant 0 : index
    %15 = vector.load %arg2[%c8_6, %c0_7] : memref<24x128xf32, #tpu.memory_space<vmem>>, vector<8x128xf32>
    %c16 = arith.constant 16 : index
    %c0_8 = arith.constant 0 : index
    %16 = vector.load %arg2[%c16, %c0_8] : memref<24x128xf32, #tpu.memory_space<vmem>>, vector<8x128xf32>
    %17 = tpu.iota {dimensions = array<i32: 1>} : vector<8x128xi32>
    %18 = tpu.iota {dimensions = array<i32: 0>} : vector<8x128xi32>
    %19 = tpu.iota {dimensions = array<i32: 0>} : vector<8x1xi32>
    %c1024_i32 = arith.constant 1024 : i32
    %20 = arith.muli %arg0, %c1024_i32 : i32
    %c128_i32 = arith.constant 128 : i32
    %21 = vector.broadcast %c128_i32 : i32 to vector<8x128xi32>
    %22 = arith.muli %18, %21 : vector<8x128xi32>
    %23 = vector.broadcast %20 : i32 to vector<8x128xi32>
    %24 = arith.addi %23, %22 : vector<8x128xi32>
    %25 = arith.addi %24, %17 : vector<8x128xi32>
    %26 = arith.sitofp %25 : vector<8x128xi32> to vector<8x128xf32>
    %cst = arith.constant 1.000000e+00 : f32
    %27 = vector.broadcast %cst : f32 to vector<8x128xf32>
    %28 = arith.addf %26, %27 : vector<8x128xf32>
    %29 = vector.broadcast %6 : f32 to vector<8x128xf32>
    %30 = arith.mulf %28, %29 : vector<8x128xf32>
    %31 = math.exp %30 : vector<8x128xf32>
    %32 = vector.broadcast %7 : f32 to vector<8x128xf32>
    %33 = arith.mulf %32, %31 : vector<8x128xf32>
    %34 = vector.broadcast %8 : f32 to vector<8x128xf32>
    %35 = arith.mulf %34, %31 : vector<8x128xf32>
    %c24 = arith.constant 24 : index
    %c0_9 = arith.constant 0 : index
    %36 = vector.load %arg3[%c24, %c0_9] : memref<40x128xf32, #tpu.memory_space<vmem>>, vector<8x128xf32>
    tpu.vector_store %arg3[%c24, %c0_9], %33 {strides = array<i32>} : memref<40x128xf32, #tpu.memory_space<vmem>>, vector<8x128xf32>,
    %c32 = arith.constant 32 : index
    %c0_10 = arith.constant 0 : index
    %37 = vector.load %arg3[%c32, %c0_10] : memref<40x128xf32, #tpu.memory_space<vmem>>, vector<8x128xf32>
    tpu.vector_store %arg3[%c32, %c0_10], %35 {strides = array<i32>} : memref<40x128xf32, #tpu.memory_space<vmem>>, vector<8x128xf32>,
    %38 = arith.mulf %0, %1 : f32
    %cst_11 = arith.constant 1.000000e+00 : f32
    %39 = arith.addf %cst_11, %38 : f32
    %40 = arith.mulf %0, %5 : f32
    %41 = vector.broadcast %40 : f32 to vector<8x128xf32>
    %42 = arith.mulf %41, %15 : vector<8x128xf32>
    %43 = vector.broadcast %39 : f32 to vector<8x128xf32>
    %44 = arith.subf %43, %42 : vector<8x128xf32>
    %45 = arith.mulf %0, %2 : f32
    %46 = vector.broadcast %45 : f32 to vector<8x128xf32>
    %47 = arith.mulf %0, %3 : f32
    %48 = arith.mulf %0, %5 : f32
    %49 = vector.broadcast %48 : f32 to vector<8x128xf32>
    %50 = arith.mulf %49, %16 : vector<8x128xf32>
    %51 = vector.broadcast %47 : f32 to vector<8x128xf32>
    %52 = arith.subf %51, %50 : vector<8x128xf32>
    %53 = arith.mulf %0, %4 : f32
    %cst_12 = arith.constant 1.000000e+00 : f32
    %54 = arith.addf %cst_12, %53 : f32
    %55 = vector.broadcast %54 : f32 to vector<8x128xf32>
    %56 = arith.mulf %15, %14 : vector<8x128xf32>
    %57 = vector.broadcast %0 : f32 to vector<8x128xf32>
    %58 = arith.mulf %33, %57 : vector<8x128xf32>
    %59 = arith.addf %56, %58 : vector<8x128xf32>
    %60 = arith.mulf %16, %14 : vector<8x128xf32>
    %61 = vector.broadcast %0 : f32 to vector<8x128xf32>
    %62 = arith.mulf %35, %61 : vector<8x128xf32>
    %63 = arith.addf %60, %62 : vector<8x128xf32>
    %c1_i32 = arith.constant 1 : i32
    %64 = vector.broadcast %c1_i32 : i32 to vector<8x128xi32>
    %65 = arith.cmpi slt, %17, %64 : vector<8x128xi32>
    %c1_i32_13 = arith.constant 1 : i32
    %66 = tpu.dynamic_rotate %44 by %c1_i32_13 dim 1 : vector<8x128xf32>, i32 -> vector<8x128xf32>
    %cst_14 = arith.constant 1.000000e+00 : f32
    %67 = vector.broadcast %cst_14 : f32 to vector<8x128xf32>
    %68 = arith.select %65, %67, %66 : vector<8x128xi1>, vector<8x128xf32>
    %c1_i32_15 = arith.constant 1 : i32
    %69 = tpu.dynamic_rotate %46 by %c1_i32_15 dim 1 : vector<8x128xf32>, i32 -> vector<8x128xf32>
    %cst_16 = arith.constant 0.000000e+00 : f32
    %70 = vector.broadcast %cst_16 : f32 to vector<8x128xf32>
    %71 = arith.select %65, %70, %69 : vector<8x128xi1>, vector<8x128xf32>
    %c1_i32_17 = arith.constant 1 : i32
    %72 = tpu.dynamic_rotate %52 by %c1_i32_17 dim 1 : vector<8x128xf32>, i32 -> vector<8x128xf32>
    %cst_18 = arith.constant 0.000000e+00 : f32
    %73 = vector.broadcast %cst_18 : f32 to vector<8x128xf32>
    %74 = arith.select %65, %73, %72 : vector<8x128xi1>, vector<8x128xf32>
    %c1_i32_19 = arith.constant 1 : i32
    %75 = tpu.dynamic_rotate %55 by %c1_i32_19 dim 1 : vector<8x128xf32>, i32 -> vector<8x128xf32>
    %cst_20 = arith.constant 1.000000e+00 : f32
    %76 = vector.broadcast %cst_20 : f32 to vector<8x128xf32>
    %77 = arith.select %65, %76, %75 : vector<8x128xi1>, vector<8x128xf32>
    %c1_i32_21 = arith.constant 1 : i32
    %78 = tpu.dynamic_rotate %59 by %c1_i32_21 dim 1 : vector<8x128xf32>, i32 -> vector<8x128xf32>
    %cst_22 = arith.constant 0.000000e+00 : f32
    %79 = vector.broadcast %cst_22 : f32 to vector<8x128xf32>
    %80 = arith.select %65, %79, %78 : vector<8x128xi1>, vector<8x128xf32>
    %c1_i32_23 = arith.constant 1 : i32
    %81 = tpu.dynamic_rotate %63 by %c1_i32_23 dim 1 : vector<8x128xf32>, i32 -> vector<8x128xf32>
    %cst_24 = arith.constant 0.000000e+00 : f32
    %82 = vector.broadcast %cst_24 : f32 to vector<8x128xf32>
    %83 = arith.select %65, %82, %81 : vector<8x128xi1>, vector<8x128xf32>
    %84 = arith.mulf %44, %68 : vector<8x128xf32>
    %85 = arith.mulf %46, %74 : vector<8x128xf32>
    %86 = arith.addf %84, %85 : vector<8x128xf32>
    %87 = arith.mulf %44, %71 : vector<8x128xf32>
    %88 = arith.mulf %46, %77 : vector<8x128xf32>
    %89 = arith.addf %87, %88 : vector<8x128xf32>
    %90 = arith.mulf %52, %68 : vector<8x128xf32>
    %91 = arith.mulf %55, %74 : vector<8x128xf32>
    %92 = arith.addf %90, %91 : vector<8x128xf32>
    %93 = arith.mulf %52, %71 : vector<8x128xf32>
    %94 = arith.mulf %55, %77 : vector<8x128xf32>
    %95 = arith.addf %93, %94 : vector<8x128xf32>
    %96 = arith.mulf %44, %80 : vector<8x128xf32>
    %97 = arith.mulf %46, %83 : vector<8x128xf32>
    %98 = arith.addf %96, %97 : vector<8x128xf32>
    %99 = arith.addf %98, %59 : vector<8x128xf32>
    %100 = arith.mulf %52, %80 : vector<8x128xf32>
    %101 = arith.mulf %55, %83 : vector<8x128xf32>
    %102 = arith.addf %100, %101 : vector<8x128xf32>
    %103 = arith.addf %102, %63 : vector<8x128xf32>
    %c2_i32 = arith.constant 2 : i32
    %104 = vector.broadcast %c2_i32 : i32 to vector<8x128xi32>
    %105 = arith.cmpi slt, %17, %104 : vector<8x128xi32>
    %c2_i32_25 = arith.constant 2 : i32
    %106 = tpu.dynamic_rotate %86 by %c2_i32_25 dim 1 : vector<8x128xf32>, i32 -> vector<8x128xf32>
    %cst_26 = arith.constant 1.000000e+00 : f32
    %107 = vector.broadcast %cst_26 : f32 to vector<8x128xf32>
    %108 = arith.select %105, %107, %106 : vector<8x128xi1>, vector<8x128xf32>
    %c2_i32_27 = arith.constant 2 : i32
    %109 = tpu.dynamic_rotate %89 by %c2_i32_27 dim 1 : vector<8x128xf32>, i32 -> vector<8x128xf32>
    %cst_28 = arith.constant 0.000000e+00 : f32
    %110 = vector.broadcast %cst_28 : f32 to vector<8x128xf32>
    %111 = arith.select %105, %110, %109 : vector<8x128xi1>, vector<8x128xf32>
    %c2_i32_29 = arith.constant 2 : i32
    %112 = tpu.dynamic_rotate %92 by %c2_i32_29 dim 1 : vector<8x128xf32>, i32 -> vector<8x128xf32>
    %cst_30 = arith.constant 0.000000e+00 : f32
    %113 = vector.broadcast %cst_30 : f32 to vector<8x128xf32>
    %114 = arith.select %105, %113, %112 : vector<8x128xi1>, vector<8x128xf32>
    %c2_i32_31 = arith.constant 2 : i32
    %115 = tpu.dynamic_rotate %95 by %c2_i32_31 dim 1 : vector<8x128xf32>, i32 -> vector<8x128xf32>
    %cst_32 = arith.constant 1.000000e+00 : f32
    %116 = vector.broadcast %cst_32 : f32 to vector<8x128xf32>
    %117 = arith.select %105, %116, %115 : vector<8x128xi1>, vector<8x128xf32>
    %c2_i32_33 = arith.constant 2 : i32
    %118 = tpu.dynamic_rotate %99 by %c2_i32_33 dim 1 : vector<8x128xf32>, i32 -> vector<8x128xf32>
    %cst_34 = arith.constant 0.000000e+00 : f32
    %119 = vector.broadcast %cst_34 : f32 to vector<8x128xf32>
    %120 = arith.select %105, %119, %118 : vector<8x128xi1>, vector<8x128xf32>
    %c2_i32_35 = arith.constant 2 : i32
    %121 = tpu.dynamic_rotate %103 by %c2_i32_35 dim 1 : vector<8x128xf32>, i32 -> vector<8x128xf32>
    %cst_36 = arith.constant 0.000000e+00 : f32
    %122 = vector.broadcast %cst_36 : f32 to vector<8x128xf32>
    %123 = arith.select %105, %122, %121 : vector<8x128xi1>, vector<8x128xf32>
    %124 = arith.mulf %86, %108 : vector<8x128xf32>
    %125 = arith.mulf %89, %114 : vector<8x128xf32>
    %126 = arith.addf %124, %125 : vector<8x128xf32>
    %127 = arith.mulf %86, %111 : vector<8x128xf32>
    %128 = arith.mulf %89, %117 : vector<8x128xf32>
    %129 = arith.addf %127, %128 : vector<8x128xf32>
    %130 = arith.mulf %92, %108 : vector<8x128xf32>
    %131 = arith.mulf %95, %114 : vector<8x128xf32>
    %132 = arith.addf %130, %131 : vector<8x128xf32>
    %133 = arith.mulf %92, %111 : vector<8x128xf32>
    %134 = arith.mulf %95, %117 : vector<8x128xf32>
    %135 = arith.addf %133, %134 : vector<8x128xf32>
    %136 = arith.mulf %86, %120 : vector<8x128xf32>
    %137 = arith.mulf %89, %123 : vector<8x128xf32>
    %138 = arith.addf %136, %137 : vector<8x128xf32>
    %139 = arith.addf %138, %99 : vector<8x128xf32>
    %140 = arith.mulf %92, %120 : vector<8x128xf32>
    %141 = arith.mulf %95, %123 : vector<8x128xf32>
    %142 = arith.addf %140, %141 : vector<8x128xf32>
    %143 = arith.addf %142, %103 : vector<8x128xf32>
    %c4_i32 = arith.constant 4 : i32
    %144 = vector.broadcast %c4_i32 : i32 to vector<8x128xi32>
    %145 = arith.cmpi slt, %17, %144 : vector<8x128xi32>
    %c4_i32_37 = arith.constant 4 : i32
    %146 = tpu.dynamic_rotate %126 by %c4_i32_37 dim 1 : vector<8x128xf32>, i32 -> vector<8x128xf32>
    %cst_38 = arith.constant 1.000000e+00 : f32
    %147 = vector.broadcast %cst_38 : f32 to vector<8x128xf32>
    %148 = arith.select %145, %147, %146 : vector<8x128xi1>, vector<8x128xf32>
    %c4_i32_39 = arith.constant 4 : i32
    %149 = tpu.dynamic_rotate %129 by %c4_i32_39 dim 1 : vector<8x128xf32>, i32 -> vector<8x128xf32>
    %cst_40 = arith.constant 0.000000e+00 : f32
    %150 = vector.broadcast %cst_40 : f32 to vector<8x128xf32>
    %151 = arith.select %145, %150, %149 : vector<8x128xi1>, vector<8x128xf32>
    %c4_i32_41 = arith.constant 4 : i32
    %152 = tpu.dynamic_rotate %132 by %c4_i32_41 dim 1 : vector<8x128xf32>, i32 -> vector<8x128xf32>
    %cst_42 = arith.constant 0.000000e+00 : f32
    %153 = vector.broadcast %cst_42 : f32 to vector<8x128xf32>
    %154 = arith.select %145, %153, %152 : vector<8x128xi1>, vector<8x128xf32>
    %c4_i32_43 = arith.constant 4 : i32
    %155 = tpu.dynamic_rotate %135 by %c4_i32_43 dim 1 : vector<8x128xf32>, i32 -> vector<8x128xf32>
    %cst_44 = arith.constant 1.000000e+00 : f32
    %156 = vector.broadcast %cst_44 : f32 to vector<8x128xf32>
    %157 = arith.select %145, %156, %155 : vector<8x128xi1>, vector<8x128xf32>
    %c4_i32_45 = arith.constant 4 : i32
    %158 = tpu.dynamic_rotate %139 by %c4_i32_45 dim 1 : vector<8x128xf32>, i32 -> vector<8x128xf32>
    %cst_46 = arith.constant 0.000000e+00 : f32
    %159 = vector.broadcast %cst_46 : f32 to vector<8x128xf32>
    %160 = arith.select %145, %159, %158 : vector<8x128xi1>, vector<8x128xf32>
    %c4_i32_47 = arith.constant 4 : i32
    %161 = tpu.dynamic_rotate %143 by %c4_i32_47 dim 1 : vector<8x128xf32>, i32 -> vector<8x128xf32>
    %cst_48 = arith.constant 0.000000e+00 : f32
    %162 = vector.broadcast %cst_48 : f32 to vector<8x128xf32>
    %163 = arith.select %145, %162, %161 : vector<8x128xi1>, vector<8x128xf32>
    %164 = arith.mulf %126, %148 : vector<8x128xf32>
    %165 = arith.mulf %129, %154 : vector<8x128xf32>
    %166 = arith.addf %164, %165 : vector<8x128xf32>
    %167 = arith.mulf %126, %151 : vector<8x128xf32>
    %168 = arith.mulf %129, %157 : vector<8x128xf32>
    %169 = arith.addf %167, %168 : vector<8x128xf32>
    %170 = arith.mulf %132, %148 : vector<8x128xf32>
    %171 = arith.mulf %135, %154 : vector<8x128xf32>
    %172 = arith.addf %170, %171 : vector<8x128xf32>
    %173 = arith.mulf %132, %151 : vector<8x128xf32>
    %174 = arith.mulf %135, %157 : vector<8x128xf32>
    %175 = arith.addf %173, %174 : vector<8x128xf32>
    %176 = arith.mulf %126, %160 : vector<8x128xf32>
    %177 = arith.mulf %129, %163 : vector<8x128xf32>
    %178 = arith.addf %176, %177 : vector<8x128xf32>
    %179 = arith.addf %178, %139 : vector<8x128xf32>
    %180 = arith.mulf %132, %160 : vector<8x128xf32>
    %181 = arith.mulf %135, %163 : vector<8x128xf32>
    %182 = arith.addf %180, %181 : vector<8x128xf32>
    %183 = arith.addf %182, %143 : vector<8x128xf32>
    %c8_i32 = arith.constant 8 : i32
    %184 = vector.broadcast %c8_i32 : i32 to vector<8x128xi32>
    %185 = arith.cmpi slt, %17, %184 : vector<8x128xi32>
    %c8_i32_49 = arith.constant 8 : i32
    %186 = tpu.dynamic_rotate %166 by %c8_i32_49 dim 1 : vector<8x128xf32>, i32 -> vector<8x128xf32>
    %cst_50 = arith.constant 1.000000e+00 : f32
    %187 = vector.broadcast %cst_50 : f32 to vector<8x128xf32>
    %188 = arith.select %185, %187, %186 : vector<8x128xi1>, vector<8x128xf32>
    %c8_i32_51 = arith.constant 8 : i32
    %189 = tpu.dynamic_rotate %169 by %c8_i32_51 dim 1 : vector<8x128xf32>, i32 -> vector<8x128xf32>
    %cst_52 = arith.constant 0.000000e+00 : f32
    %190 = vector.broadcast %cst_52 : f32 to vector<8x128xf32>
    %191 = arith.select %185, %190, %189 : vector<8x128xi1>, vector<8x128xf32>
    %c8_i32_53 = arith.constant 8 : i32
    %192 = tpu.dynamic_rotate %172 by %c8_i32_53 dim 1 : vector<8x128xf32>, i32 -> vector<8x128xf32>
    %cst_54 = arith.constant 0.000000e+00 : f32
    %193 = vector.broadcast %cst_54 : f32 to vector<8x128xf32>
    %194 = arith.select %185, %193, %192 : vector<8x128xi1>, vector<8x128xf32>
    %c8_i32_55 = arith.constant 8 : i32
    %195 = tpu.dynamic_rotate %175 by %c8_i32_55 dim 1 : vector<8x128xf32>, i32 -> vector<8x128xf32>
    %cst_56 = arith.constant 1.000000e+00 : f32
    %196 = vector.broadcast %cst_56 : f32 to vector<8x128xf32>
    %197 = arith.select %185, %196, %195 : vector<8x128xi1>, vector<8x128xf32>
    %c8_i32_57 = arith.constant 8 : i32
    %198 = tpu.dynamic_rotate %179 by %c8_i32_57 dim 1 : vector<8x128xf32>, i32 -> vector<8x128xf32>
    %cst_58 = arith.constant 0.000000e+00 : f32
    %199 = vector.broadcast %cst_58 : f32 to vector<8x128xf32>
    %200 = arith.select %185, %199, %198 : vector<8x128xi1>, vector<8x128xf32>
    %c8_i32_59 = arith.constant 8 : i32
    %201 = tpu.dynamic_rotate %183 by %c8_i32_59 dim 1 : vector<8x128xf32>, i32 -> vector<8x128xf32>
    %cst_60 = arith.constant 0.000000e+00 : f32
    %202 = vector.broadcast %cst_60 : f32 to vector<8x128xf32>
    %203 = arith.select %185, %202, %201 : vector<8x128xi1>, vector<8x128xf32>
    %204 = arith.mulf %166, %188 : vector<8x128xf32>
    %205 = arith.mulf %169, %194 : vector<8x128xf32>
    %206 = arith.addf %204, %205 : vector<8x128xf32>
    %207 = arith.mulf %166, %191 : vector<8x128xf32>
    %208 = arith.mulf %169, %197 : vector<8x128xf32>
    %209 = arith.addf %207, %208 : vector<8x128xf32>
    %210 = arith.mulf %172, %188 : vector<8x128xf32>
    %211 = arith.mulf %175, %194 : vector<8x128xf32>
    %212 = arith.addf %210, %211 : vector<8x128xf32>
    %213 = arith.mulf %172, %191 : vector<8x128xf32>
    %214 = arith.mulf %175, %197 : vector<8x128xf32>
    %215 = arith.addf %213, %214 : vector<8x128xf32>
    %216 = arith.mulf %166, %200 : vector<8x128xf32>
    %217 = arith.mulf %169, %203 : vector<8x128xf32>
    %218 = arith.addf %216, %217 : vector<8x128xf32>
    %219 = arith.addf %218, %179 : vector<8x128xf32>
    %220 = arith.mulf %172, %200 : vector<8x128xf32>
    %221 = arith.mulf %175, %203 : vector<8x128xf32>
    %222 = arith.addf %220, %221 : vector<8x128xf32>
    %223 = arith.addf %222, %183 : vector<8x128xf32>
    %c16_i32 = arith.constant 16 : i32
    %224 = vector.broadcast %c16_i32 : i32 to vector<8x128xi32>
    %225 = arith.cmpi slt, %17, %224 : vector<8x128xi32>
    %c16_i32_61 = arith.constant 16 : i32
    %226 = tpu.dynamic_rotate %206 by %c16_i32_61 dim 1 : vector<8x128xf32>, i32 -> vector<8x128xf32>
    %cst_62 = arith.constant 1.000000e+00 : f32
    %227 = vector.broadcast %cst_62 : f32 to vector<8x128xf32>
    %228 = arith.select %225, %227, %226 : vector<8x128xi1>, vector<8x128xf32>
    %c16_i32_63 = arith.constant 16 : i32
    %229 = tpu.dynamic_rotate %209 by %c16_i32_63 dim 1 : vector<8x128xf32>, i32 -> vector<8x128xf32>
    %cst_64 = arith.constant 0.000000e+00 : f32
    %230 = vector.broadcast %cst_64 : f32 to vector<8x128xf32>
    %231 = arith.select %225, %230, %229 : vector<8x128xi1>, vector<8x128xf32>
    %c16_i32_65 = arith.constant 16 : i32
    %232 = tpu.dynamic_rotate %212 by %c16_i32_65 dim 1 : vector<8x128xf32>, i32 -> vector<8x128xf32>
    %cst_66 = arith.constant 0.000000e+00 : f32
    %233 = vector.broadcast %cst_66 : f32 to vector<8x128xf32>
    %234 = arith.select %225, %233, %232 : vector<8x128xi1>, vector<8x128xf32>
    %c16_i32_67 = arith.constant 16 : i32
    %235 = tpu.dynamic_rotate %215 by %c16_i32_67 dim 1 : vector<8x128xf32>, i32 -> vector<8x128xf32>
    %cst_68 = arith.constant 1.000000e+00 : f32
    %236 = vector.broadcast %cst_68 : f32 to vector<8x128xf32>
    %237 = arith.select %225, %236, %235 : vector<8x128xi1>, vector<8x128xf32>
    %c16_i32_69 = arith.constant 16 : i32
    %238 = tpu.dynamic_rotate %219 by %c16_i32_69 dim 1 : vector<8x128xf32>, i32 -> vector<8x128xf32>
    %cst_70 = arith.constant 0.000000e+00 : f32
    %239 = vector.broadcast %cst_70 : f32 to vector<8x128xf32>
    %240 = arith.select %225, %239, %238 : vector<8x128xi1>, vector<8x128xf32>
    %c16_i32_71 = arith.constant 16 : i32
    %241 = tpu.dynamic_rotate %223 by %c16_i32_71 dim 1 : vector<8x128xf32>, i32 -> vector<8x128xf32>
    %cst_72 = arith.constant 0.000000e+00 : f32
    %242 = vector.broadcast %cst_72 : f32 to vector<8x128xf32>
    %243 = arith.select %225, %242, %241 : vector<8x128xi1>, vector<8x128xf32>
    %244 = arith.mulf %206, %228 : vector<8x128xf32>
    %245 = arith.mulf %209, %234 : vector<8x128xf32>
    %246 = arith.addf %244, %245 : vector<8x128xf32>
    %247 = arith.mulf %206, %231 : vector<8x128xf32>
    %248 = arith.mulf %209, %237 : vector<8x128xf32>
    %249 = arith.addf %247, %248 : vector<8x128xf32>
    %250 = arith.mulf %212, %228 : vector<8x128xf32>
    %251 = arith.mulf %215, %234 : vector<8x128xf32>
    %252 = arith.addf %250, %251 : vector<8x128xf32>
    %253 = arith.mulf %212, %231 : vector<8x128xf32>
    %254 = arith.mulf %215, %237 : vector<8x128xf32>
    %255 = arith.addf %253, %254 : vector<8x128xf32>
    %256 = arith.mulf %206, %240 : vector<8x128xf32>
    %257 = arith.mulf %209, %243 : vector<8x128xf32>
    %258 = arith.addf %256, %257 : vector<8x128xf32>
    %259 = arith.addf %258, %219 : vector<8x128xf32>
    %260 = arith.mulf %212, %240 : vector<8x128xf32>
    %261 = arith.mulf %215, %243 : vector<8x128xf32>
    %262 = arith.addf %260, %261 : vector<8x128xf32>
    %263 = arith.addf %262, %223 : vector<8x128xf32>
    %c32_i32 = arith.constant 32 : i32
    %264 = vector.broadcast %c32_i32 : i32 to vector<8x128xi32>
    %265 = arith.cmpi slt, %17, %264 : vector<8x128xi32>
    %c32_i32_73 = arith.constant 32 : i32
    %266 = tpu.dynamic_rotate %246 by %c32_i32_73 dim 1 : vector<8x128xf32>, i32 -> vector<8x128xf32>
    %cst_74 = arith.constant 1.000000e+00 : f32
    %267 = vector.broadcast %cst_74 : f32 to vector<8x128xf32>
    %268 = arith.select %265, %267, %266 : vector<8x128xi1>, vector<8x128xf32>
    %c32_i32_75 = arith.constant 32 : i32
    %269 = tpu.dynamic_rotate %249 by %c32_i32_75 dim 1 : vector<8x128xf32>, i32 -> vector<8x128xf32>
    %cst_76 = arith.constant 0.000000e+00 : f32
    %270 = vector.broadcast %cst_76 : f32 to vector<8x128xf32>
    %271 = arith.select %265, %270, %269 : vector<8x128xi1>, vector<8x128xf32>
    %c32_i32_77 = arith.constant 32 : i32
    %272 = tpu.dynamic_rotate %252 by %c32_i32_77 dim 1 : vector<8x128xf32>, i32 -> vector<8x128xf32>
    %cst_78 = arith.constant 0.000000e+00 : f32
    %273 = vector.broadcast %cst_78 : f32 to vector<8x128xf32>
    %274 = arith.select %265, %273, %272 : vector<8x128xi1>, vector<8x128xf32>
    %c32_i32_79 = arith.constant 32 : i32
    %275 = tpu.dynamic_rotate %255 by %c32_i32_79 dim 1 : vector<8x128xf32>, i32 -> vector<8x128xf32>
    %cst_80 = arith.constant 1.000000e+00 : f32
    %276 = vector.broadcast %cst_80 : f32 to vector<8x128xf32>
    %277 = arith.select %265, %276, %275 : vector<8x128xi1>, vector<8x128xf32>
    %c32_i32_81 = arith.constant 32 : i32
    %278 = tpu.dynamic_rotate %259 by %c32_i32_81 dim 1 : vector<8x128xf32>, i32 -> vector<8x128xf32>
    %cst_82 = arith.constant 0.000000e+00 : f32
    %279 = vector.broadcast %cst_82 : f32 to vector<8x128xf32>
    %280 = arith.select %265, %279, %278 : vector<8x128xi1>, vector<8x128xf32>
    %c32_i32_83 = arith.constant 32 : i32
    %281 = tpu.dynamic_rotate %263 by %c32_i32_83 dim 1 : vector<8x128xf32>, i32 -> vector<8x128xf32>
    %cst_84 = arith.constant 0.000000e+00 : f32
    %282 = vector.broadcast %cst_84 : f32 to vector<8x128xf32>
    %283 = arith.select %265, %282, %281 : vector<8x128xi1>, vector<8x128xf32>
    %284 = arith.mulf %246, %268 : vector<8x128xf32>
    %285 = arith.mulf %249, %274 : vector<8x128xf32>
    %286 = arith.addf %284, %285 : vector<8x128xf32>
    %287 = arith.mulf %246, %271 : vector<8x128xf32>
    %288 = arith.mulf %249, %277 : vector<8x128xf32>
    %289 = arith.addf %287, %288 : vector<8x128xf32>
    %290 = arith.mulf %252, %268 : vector<8x128xf32>
    %291 = arith.mulf %255, %274 : vector<8x128xf32>
    %292 = arith.addf %290, %291 : vector<8x128xf32>
    %293 = arith.mulf %252, %271 : vector<8x128xf32>
    %294 = arith.mulf %255, %277 : vector<8x128xf32>
    %295 = arith.addf %293, %294 : vector<8x128xf32>
    %296 = arith.mulf %246, %280 : vector<8x128xf32>
    %297 = arith.mulf %249, %283 : vector<8x128xf32>
    %298 = arith.addf %296, %297 : vector<8x128xf32>
    %299 = arith.addf %298, %259 : vector<8x128xf32>
    %300 = arith.mulf %252, %280 : vector<8x128xf32>
    %301 = arith.mulf %255, %283 : vector<8x128xf32>
    %302 = arith.addf %300, %301 : vector<8x128xf32>
    %303 = arith.addf %302, %263 : vector<8x128xf32>
    %c64_i32 = arith.constant 64 : i32
    %304 = vector.broadcast %c64_i32 : i32 to vector<8x128xi32>
    %305 = arith.cmpi slt, %17, %304 : vector<8x128xi32>
    %c64_i32_85 = arith.constant 64 : i32
    %306 = tpu.dynamic_rotate %286 by %c64_i32_85 dim 1 : vector<8x128xf32>, i32 -> vector<8x128xf32>
    %cst_86 = arith.constant 1.000000e+00 : f32
    %307 = vector.broadcast %cst_86 : f32 to vector<8x128xf32>
    %308 = arith.select %305, %307, %306 : vector<8x128xi1>, vector<8x128xf32>
    %c64_i32_87 = arith.constant 64 : i32
    %309 = tpu.dynamic_rotate %289 by %c64_i32_87 dim 1 : vector<8x128xf32>, i32 -> vector<8x128xf32>
    %cst_88 = arith.constant 0.000000e+00 : f32
    %310 = vector.broadcast %cst_88 : f32 to vector<8x128xf32>
    %311 = arith.select %305, %310, %309 : vector<8x128xi1>, vector<8x128xf32>
    %c64_i32_89 = arith.constant 64 : i32
    %312 = tpu.dynamic_rotate %292 by %c64_i32_89 dim 1 : vector<8x128xf32>, i32 -> vector<8x128xf32>
    %cst_90 = arith.constant 0.000000e+00 : f32
    %313 = vector.broadcast %cst_90 : f32 to vector<8x128xf32>
    %314 = arith.select %305, %313, %312 : vector<8x128xi1>, vector<8x128xf32>
    %c64_i32_91 = arith.constant 64 : i32
    %315 = tpu.dynamic_rotate %295 by %c64_i32_91 dim 1 : vector<8x128xf32>, i32 -> vector<8x128xf32>
    %cst_92 = arith.constant 1.000000e+00 : f32
    %316 = vector.broadcast %cst_92 : f32 to vector<8x128xf32>
    %317 = arith.select %305, %316, %315 : vector<8x128xi1>, vector<8x128xf32>
    %c64_i32_93 = arith.constant 64 : i32
    %318 = tpu.dynamic_rotate %299 by %c64_i32_93 dim 1 : vector<8x128xf32>, i32 -> vector<8x128xf32>
    %cst_94 = arith.constant 0.000000e+00 : f32
    %319 = vector.broadcast %cst_94 : f32 to vector<8x128xf32>
    %320 = arith.select %305, %319, %318 : vector<8x128xi1>, vector<8x128xf32>
    %c64_i32_95 = arith.constant 64 : i32
    %321 = tpu.dynamic_rotate %303 by %c64_i32_95 dim 1 : vector<8x128xf32>, i32 -> vector<8x128xf32>
    %cst_96 = arith.constant 0.000000e+00 : f32
    %322 = vector.broadcast %cst_96 : f32 to vector<8x128xf32>
    %323 = arith.select %305, %322, %321 : vector<8x128xi1>, vector<8x128xf32>
    %324 = arith.mulf %286, %308 : vector<8x128xf32>
    %325 = arith.mulf %289, %314 : vector<8x128xf32>
    %326 = arith.addf %324, %325 : vector<8x128xf32>
    %327 = arith.mulf %286, %311 : vector<8x128xf32>
    %328 = arith.mulf %289, %317 : vector<8x128xf32>
    %329 = arith.addf %327, %328 : vector<8x128xf32>
    %330 = arith.mulf %292, %308 : vector<8x128xf32>
    %331 = arith.mulf %295, %314 : vector<8x128xf32>
    %332 = arith.addf %330, %331 : vector<8x128xf32>
    %333 = arith.mulf %292, %311 : vector<8x128xf32>
    %334 = arith.mulf %295, %317 : vector<8x128xf32>
    %335 = arith.addf %333, %334 : vector<8x128xf32>
    %336 = arith.mulf %286, %320 : vector<8x128xf32>
    %337 = arith.mulf %289, %323 : vector<8x128xf32>
    %338 = arith.addf %336, %337 : vector<8x128xf32>
    %339 = arith.addf %338, %299 : vector<8x128xf32>
    %340 = arith.mulf %292, %320 : vector<8x128xf32>
    %341 = arith.mulf %295, %323 : vector<8x128xf32>
    %342 = arith.addf %340, %341 : vector<8x128xf32>
    %343 = arith.addf %342, %303 : vector<8x128xf32>
    %c1_i32_97 = arith.constant 1 : i32
    %344 = tpu.dynamic_rotate %326 by %c1_i32_97 dim 0 : vector<8x128xf32>, i32 -> vector<8x128xf32>
    %345 = vector.extract_strided_slice %344 {offsets = [0, 127], sizes = [8, 1], strides = [1, 1]} : vector<8x128xf32> to vector<8x1xf32>
    %c1_i32_98 = arith.constant 1 : i32
    %346 = vector.broadcast %c1_i32_98 : i32 to vector<8x1xi32>
    %347 = arith.cmpi slt, %19, %346 : vector<8x1xi32>
    %cst_99 = arith.constant 1.000000e+00 : f32
    %348 = vector.broadcast %cst_99 : f32 to vector<8x1xf32>
    %349 = arith.select %347, %348, %345 : vector<8x1xi1>, vector<8x1xf32>
    %c1_i32_100 = arith.constant 1 : i32
    %350 = tpu.dynamic_rotate %329 by %c1_i32_100 dim 0 : vector<8x128xf32>, i32 -> vector<8x128xf32>
    %351 = vector.extract_strided_slice %350 {offsets = [0, 127], sizes = [8, 1], strides = [1, 1]} : vector<8x128xf32> to vector<8x1xf32>
    %c1_i32_101 = arith.constant 1 : i32
    %352 = vector.broadcast %c1_i32_101 : i32 to vector<8x1xi32>
    %353 = arith.cmpi slt, %19, %352 : vector<8x1xi32>
    %cst_102 = arith.constant 0.000000e+00 : f32
    %354 = vector.broadcast %cst_102 : f32 to vector<8x1xf32>
    %355 = arith.select %353, %354, %351 : vector<8x1xi1>, vector<8x1xf32>
    %c1_i32_103 = arith.constant 1 : i32
    %356 = tpu.dynamic_rotate %332 by %c1_i32_103 dim 0 : vector<8x128xf32>, i32 -> vector<8x128xf32>
    %357 = vector.extract_strided_slice %356 {offsets = [0, 127], sizes = [8, 1], strides = [1, 1]} : vector<8x128xf32> to vector<8x1xf32>
    %c1_i32_104 = arith.constant 1 : i32
    %358 = vector.broadcast %c1_i32_104 : i32 to vector<8x1xi32>
    %359 = arith.cmpi slt, %19, %358 : vector<8x1xi32>
    %cst_105 = arith.constant 0.000000e+00 : f32
    %360 = vector.broadcast %cst_105 : f32 to vector<8x1xf32>
    %361 = arith.select %359, %360, %357 : vector<8x1xi1>, vector<8x1xf32>
    %c1_i32_106 = arith.constant 1 : i32
    %362 = tpu.dynamic_rotate %335 by %c1_i32_106 dim 0 : vector<8x128xf32>, i32 -> vector<8x128xf32>
    %363 = vector.extract_strided_slice %362 {offsets = [0, 127], sizes = [8, 1], strides = [1, 1]} : vector<8x128xf32> to vector<8x1xf32>
    %c1_i32_107 = arith.constant 1 : i32
    %364 = vector.broadcast %c1_i32_107 : i32 to vector<8x1xi32>
    %365 = arith.cmpi slt, %19, %364 : vector<8x1xi32>
    %cst_108 = arith.constant 1.000000e+00 : f32
    %366 = vector.broadcast %cst_108 : f32 to vector<8x1xf32>
    %367 = arith.select %365, %366, %363 : vector<8x1xi1>, vector<8x1xf32>
    %c1_i32_109 = arith.constant 1 : i32
    %368 = tpu.dynamic_rotate %339 by %c1_i32_109 dim 0 : vector<8x128xf32>, i32 -> vector<8x128xf32>
    %369 = vector.extract_strided_slice %368 {offsets = [0, 127], sizes = [8, 1], strides = [1, 1]} : vector<8x128xf32> to vector<8x1xf32>
    %c1_i32_110 = arith.constant 1 : i32
    %370 = vector.broadcast %c1_i32_110 : i32 to vector<8x1xi32>
    %371 = arith.cmpi slt, %19, %370 : vector<8x1xi32>
    %cst_111 = arith.constant 0.000000e+00 : f32
    %372 = vector.broadcast %cst_111 : f32 to vector<8x1xf32>
    %373 = arith.select %371, %372, %369 : vector<8x1xi1>, vector<8x1xf32>
    %c1_i32_112 = arith.constant 1 : i32
    %374 = tpu.dynamic_rotate %343 by %c1_i32_112 dim 0 : vector<8x128xf32>, i32 -> vector<8x128xf32>
    %375 = vector.extract_strided_slice %374 {offsets = [0, 127], sizes = [8, 1], strides = [1, 1]} : vector<8x128xf32> to vector<8x1xf32>
    %c1_i32_113 = arith.constant 1 : i32
    %376 = vector.broadcast %c1_i32_113 : i32 to vector<8x1xi32>
    %377 = arith.cmpi slt, %19, %376 : vector<8x1xi32>
    %cst_114 = arith.constant 0.000000e+00 : f32
    %378 = vector.broadcast %cst_114 : f32 to vector<8x1xf32>
    %379 = arith.select %377, %378, %375 : vector<8x1xi1>, vector<8x1xf32>
    %380 = vector.broadcast %349 : vector<8x1xf32> to vector<8x128xf32>
    %381 = arith.mulf %326, %380 : vector<8x128xf32>
    %382 = vector.broadcast %361 : vector<8x1xf32> to vector<8x128xf32>
    %383 = arith.mulf %329, %382 : vector<8x128xf32>
    %384 = arith.addf %381, %383 : vector<8x128xf32>
    %385 = vector.broadcast %355 : vector<8x1xf32> to vector<8x128xf32>
    %386 = arith.mulf %326, %385 : vector<8x128xf32>
    %387 = vector.broadcast %367 : vector<8x1xf32> to vector<8x128xf32>
    %388 = arith.mulf %329, %387 : vector<8x128xf32>
    %389 = arith.addf %386, %388 : vector<8x128xf32>
    %390 = vector.broadcast %349 : vector<8x1xf32> to vector<8x128xf32>
    %391 = arith.mulf %332, %390 : vector<8x128xf32>
    %392 = vector.broadcast %361 : vector<8x1xf32> to vector<8x128xf32>
    %393 = arith.mulf %335, %392 : vector<8x128xf32>
    %394 = arith.addf %391, %393 : vector<8x128xf32>
    %395 = vector.broadcast %355 : vector<8x1xf32> to vector<8x128xf32>
    %396 = arith.mulf %332, %395 : vector<8x128xf32>
    %397 = vector.broadcast %367 : vector<8x1xf32> to vector<8x128xf32>
    %398 = arith.mulf %335, %397 : vector<8x128xf32>
    %399 = arith.addf %396, %398 : vector<8x128xf32>
    %400 = vector.broadcast %373 : vector<8x1xf32> to vector<8x128xf32>
    %401 = arith.mulf %326, %400 : vector<8x128xf32>
    %402 = vector.broadcast %379 : vector<8x1xf32> to vector<8x128xf32>
    %403 = arith.mulf %329, %402 : vector<8x128xf32>
    %404 = arith.addf %401, %403 : vector<8x128xf32>
    %405 = arith.addf %404, %339 : vector<8x128xf32>
    %406 = vector.broadcast %373 : vector<8x1xf32> to vector<8x128xf32>
    %407 = arith.mulf %332, %406 : vector<8x128xf32>
    %408 = vector.broadcast %379 : vector<8x1xf32> to vector<8x128xf32>
    %409 = arith.mulf %335, %408 : vector<8x128xf32>
    %410 = arith.addf %407, %409 : vector<8x128xf32>
    %411 = arith.addf %410, %343 : vector<8x128xf32>
    %c2_i32_115 = arith.constant 2 : i32
    %412 = tpu.dynamic_rotate %384 by %c2_i32_115 dim 0 : vector<8x128xf32>, i32 -> vector<8x128xf32>
    %413 = vector.extract_strided_slice %412 {offsets = [0, 127], sizes = [8, 1], strides = [1, 1]} : vector<8x128xf32> to vector<8x1xf32>
    %c2_i32_116 = arith.constant 2 : i32
    %414 = vector.broadcast %c2_i32_116 : i32 to vector<8x1xi32>
    %415 = arith.cmpi slt, %19, %414 : vector<8x1xi32>
    %cst_117 = arith.constant 1.000000e+00 : f32
    %416 = vector.broadcast %cst_117 : f32 to vector<8x1xf32>
    %417 = arith.select %415, %416, %413 : vector<8x1xi1>, vector<8x1xf32>
    %c2_i32_118 = arith.constant 2 : i32
    %418 = tpu.dynamic_rotate %389 by %c2_i32_118 dim 0 : vector<8x128xf32>, i32 -> vector<8x128xf32>
    %419 = vector.extract_strided_slice %418 {offsets = [0, 127], sizes = [8, 1], strides = [1, 1]} : vector<8x128xf32> to vector<8x1xf32>
    %c2_i32_119 = arith.constant 2 : i32
    %420 = vector.broadcast %c2_i32_119 : i32 to vector<8x1xi32>
    %421 = arith.cmpi slt, %19, %420 : vector<8x1xi32>
    %cst_120 = arith.constant 0.000000e+00 : f32
    %422 = vector.broadcast %cst_120 : f32 to vector<8x1xf32>
    %423 = arith.select %421, %422, %419 : vector<8x1xi1>, vector<8x1xf32>
    %c2_i32_121 = arith.constant 2 : i32
    %424 = tpu.dynamic_rotate %394 by %c2_i32_121 dim 0 : vector<8x128xf32>, i32 -> vector<8x128xf32>
    %425 = vector.extract_strided_slice %424 {offsets = [0, 127], sizes = [8, 1], strides = [1, 1]} : vector<8x128xf32> to vector<8x1xf32>
    %c2_i32_122 = arith.constant 2 : i32
    %426 = vector.broadcast %c2_i32_122 : i32 to vector<8x1xi32>
    %427 = arith.cmpi slt, %19, %426 : vector<8x1xi32>
    %cst_123 = arith.constant 0.000000e+00 : f32
    %428 = vector.broadcast %cst_123 : f32 to vector<8x1xf32>
    %429 = arith.select %427, %428, %425 : vector<8x1xi1>, vector<8x1xf32>
    %c2_i32_124 = arith.constant 2 : i32
    %430 = tpu.dynamic_rotate %399 by %c2_i32_124 dim 0 : vector<8x128xf32>, i32 -> vector<8x128xf32>
    %431 = vector.extract_strided_slice %430 {offsets = [0, 127], sizes = [8, 1], strides = [1, 1]} : vector<8x128xf32> to vector<8x1xf32>
    %c2_i32_125 = arith.constant 2 : i32
    %432 = vector.broadcast %c2_i32_125 : i32 to vector<8x1xi32>
    %433 = arith.cmpi slt, %19, %432 : vector<8x1xi32>
    %cst_126 = arith.constant 1.000000e+00 : f32
    %434 = vector.broadcast %cst_126 : f32 to vector<8x1xf32>
    %435 = arith.select %433, %434, %431 : vector<8x1xi1>, vector<8x1xf32>
    %c2_i32_127 = arith.constant 2 : i32
    %436 = tpu.dynamic_rotate %405 by %c2_i32_127 dim 0 : vector<8x128xf32>, i32 -> vector<8x128xf32>
    %437 = vector.extract_strided_slice %436 {offsets = [0, 127], sizes = [8, 1], strides = [1, 1]} : vector<8x128xf32> to vector<8x1xf32>
    %c2_i32_128 = arith.constant 2 : i32
    %438 = vector.broadcast %c2_i32_128 : i32 to vector<8x1xi32>
    %439 = arith.cmpi slt, %19, %438 : vector<8x1xi32>
    %cst_129 = arith.constant 0.000000e+00 : f32
    %440 = vector.broadcast %cst_129 : f32 to vector<8x1xf32>
    %441 = arith.select %439, %440, %437 : vector<8x1xi1>, vector<8x1xf32>
    %c2_i32_130 = arith.constant 2 : i32
    %442 = tpu.dynamic_rotate %411 by %c2_i32_130 dim 0 : vector<8x128xf32>, i32 -> vector<8x128xf32>
    %443 = vector.extract_strided_slice %442 {offsets = [0, 127], sizes = [8, 1], strides = [1, 1]} : vector<8x128xf32> to vector<8x1xf32>
    %c2_i32_131 = arith.constant 2 : i32
    %444 = vector.broadcast %c2_i32_131 : i32 to vector<8x1xi32>
    %445 = arith.cmpi slt, %19, %444 : vector<8x1xi32>
    %cst_132 = arith.constant 0.000000e+00 : f32
    %446 = vector.broadcast %cst_132 : f32 to vector<8x1xf32>
    %447 = arith.select %445, %446, %443 : vector<8x1xi1>, vector<8x1xf32>
    %448 = vector.broadcast %417 : vector<8x1xf32> to vector<8x128xf32>
    %449 = arith.mulf %384, %448 : vector<8x128xf32>
    %450 = vector.broadcast %429 : vector<8x1xf32> to vector<8x128xf32>
    %451 = arith.mulf %389, %450 : vector<8x128xf32>
    %452 = arith.addf %449, %451 : vector<8x128xf32>
    %453 = vector.broadcast %423 : vector<8x1xf32> to vector<8x128xf32>
    %454 = arith.mulf %384, %453 : vector<8x128xf32>
    %455 = vector.broadcast %435 : vector<8x1xf32> to vector<8x128xf32>
    %456 = arith.mulf %389, %455 : vector<8x128xf32>
    %457 = arith.addf %454, %456 : vector<8x128xf32>
    %458 = vector.broadcast %417 : vector<8x1xf32> to vector<8x128xf32>
    %459 = arith.mulf %394, %458 : vector<8x128xf32>
    %460 = vector.broadcast %429 : vector<8x1xf32> to vector<8x128xf32>
    %461 = arith.mulf %399, %460 : vector<8x128xf32>
    %462 = arith.addf %459, %461 : vector<8x128xf32>
    %463 = vector.broadcast %423 : vector<8x1xf32> to vector<8x128xf32>
    %464 = arith.mulf %394, %463 : vector<8x128xf32>
    %465 = vector.broadcast %435 : vector<8x1xf32> to vector<8x128xf32>
    %466 = arith.mulf %399, %465 : vector<8x128xf32>
    %467 = arith.addf %464, %466 : vector<8x128xf32>
    %468 = vector.broadcast %441 : vector<8x1xf32> to vector<8x128xf32>
    %469 = arith.mulf %384, %468 : vector<8x128xf32>
    %470 = vector.broadcast %447 : vector<8x1xf32> to vector<8x128xf32>
    %471 = arith.mulf %389, %470 : vector<8x128xf32>
    %472 = arith.addf %469, %471 : vector<8x128xf32>
    %473 = arith.addf %472, %405 : vector<8x128xf32>
    %474 = vector.broadcast %441 : vector<8x1xf32> to vector<8x128xf32>
    %475 = arith.mulf %394, %474 : vector<8x128xf32>
    %476 = vector.broadcast %447 : vector<8x1xf32> to vector<8x128xf32>
    %477 = arith.mulf %399, %476 : vector<8x128xf32>
    %478 = arith.addf %475, %477 : vector<8x128xf32>
    %479 = arith.addf %478, %411 : vector<8x128xf32>
    %c4_i32_133 = arith.constant 4 : i32
    %480 = tpu.dynamic_rotate %452 by %c4_i32_133 dim 0 : vector<8x128xf32>, i32 -> vector<8x128xf32>
    %481 = vector.extract_strided_slice %480 {offsets = [0, 127], sizes = [8, 1], strides = [1, 1]} : vector<8x128xf32> to vector<8x1xf32>
    %c4_i32_134 = arith.constant 4 : i32
    %482 = vector.broadcast %c4_i32_134 : i32 to vector<8x1xi32>
    %483 = arith.cmpi slt, %19, %482 : vector<8x1xi32>
    %cst_135 = arith.constant 1.000000e+00 : f32
    %484 = vector.broadcast %cst_135 : f32 to vector<8x1xf32>
    %485 = arith.select %483, %484, %481 : vector<8x1xi1>, vector<8x1xf32>
    %c4_i32_136 = arith.constant 4 : i32
    %486 = tpu.dynamic_rotate %457 by %c4_i32_136 dim 0 : vector<8x128xf32>, i32 -> vector<8x128xf32>
    %487 = vector.extract_strided_slice %486 {offsets = [0, 127], sizes = [8, 1], strides = [1, 1]} : vector<8x128xf32> to vector<8x1xf32>
    %c4_i32_137 = arith.constant 4 : i32
    %488 = vector.broadcast %c4_i32_137 : i32 to vector<8x1xi32>
    %489 = arith.cmpi slt, %19, %488 : vector<8x1xi32>
    %cst_138 = arith.constant 0.000000e+00 : f32
    %490 = vector.broadcast %cst_138 : f32 to vector<8x1xf32>
    %491 = arith.select %489, %490, %487 : vector<8x1xi1>, vector<8x1xf32>
    %c4_i32_139 = arith.constant 4 : i32
    %492 = tpu.dynamic_rotate %462 by %c4_i32_139 dim 0 : vector<8x128xf32>, i32 -> vector<8x128xf32>
    %493 = vector.extract_strided_slice %492 {offsets = [0, 127], sizes = [8, 1], strides = [1, 1]} : vector<8x128xf32> to vector<8x1xf32>
    %c4_i32_140 = arith.constant 4 : i32
    %494 = vector.broadcast %c4_i32_140 : i32 to vector<8x1xi32>
    %495 = arith.cmpi slt, %19, %494 : vector<8x1xi32>
    %cst_141 = arith.constant 0.000000e+00 : f32
    %496 = vector.broadcast %cst_141 : f32 to vector<8x1xf32>
    %497 = arith.select %495, %496, %493 : vector<8x1xi1>, vector<8x1xf32>
    %c4_i32_142 = arith.constant 4 : i32
    %498 = tpu.dynamic_rotate %467 by %c4_i32_142 dim 0 : vector<8x128xf32>, i32 -> vector<8x128xf32>
    %499 = vector.extract_strided_slice %498 {offsets = [0, 127], sizes = [8, 1], strides = [1, 1]} : vector<8x128xf32> to vector<8x1xf32>
    %c4_i32_143 = arith.constant 4 : i32
    %500 = vector.broadcast %c4_i32_143 : i32 to vector<8x1xi32>
    %501 = arith.cmpi slt, %19, %500 : vector<8x1xi32>
    %cst_144 = arith.constant 1.000000e+00 : f32
    %502 = vector.broadcast %cst_144 : f32 to vector<8x1xf32>
    %503 = arith.select %501, %502, %499 : vector<8x1xi1>, vector<8x1xf32>
    %c4_i32_145 = arith.constant 4 : i32
    %504 = tpu.dynamic_rotate %473 by %c4_i32_145 dim 0 : vector<8x128xf32>, i32 -> vector<8x128xf32>
    %505 = vector.extract_strided_slice %504 {offsets = [0, 127], sizes = [8, 1], strides = [1, 1]} : vector<8x128xf32> to vector<8x1xf32>
    %c4_i32_146 = arith.constant 4 : i32
    %506 = vector.broadcast %c4_i32_146 : i32 to vector<8x1xi32>
    %507 = arith.cmpi slt, %19, %506 : vector<8x1xi32>
    %cst_147 = arith.constant 0.000000e+00 : f32
    %508 = vector.broadcast %cst_147 : f32 to vector<8x1xf32>
    %509 = arith.select %507, %508, %505 : vector<8x1xi1>, vector<8x1xf32>
    %c4_i32_148 = arith.constant 4 : i32
    %510 = tpu.dynamic_rotate %479 by %c4_i32_148 dim 0 : vector<8x128xf32>, i32 -> vector<8x128xf32>
    %511 = vector.extract_strided_slice %510 {offsets = [0, 127], sizes = [8, 1], strides = [1, 1]} : vector<8x128xf32> to vector<8x1xf32>
    %c4_i32_149 = arith.constant 4 : i32
    %512 = vector.broadcast %c4_i32_149 : i32 to vector<8x1xi32>
    %513 = arith.cmpi slt, %19, %512 : vector<8x1xi32>
    %cst_150 = arith.constant 0.000000e+00 : f32
    %514 = vector.broadcast %cst_150 : f32 to vector<8x1xf32>
    %515 = arith.select %513, %514, %511 : vector<8x1xi1>, vector<8x1xf32>
    %516 = vector.broadcast %485 : vector<8x1xf32> to vector<8x128xf32>
    %517 = arith.mulf %452, %516 : vector<8x128xf32>
    %518 = vector.broadcast %497 : vector<8x1xf32> to vector<8x128xf32>
    %519 = arith.mulf %457, %518 : vector<8x128xf32>
    %520 = arith.addf %517, %519 : vector<8x128xf32>
    %521 = vector.broadcast %491 : vector<8x1xf32> to vector<8x128xf32>
    %522 = arith.mulf %452, %521 : vector<8x128xf32>
    %523 = vector.broadcast %503 : vector<8x1xf32> to vector<8x128xf32>
    %524 = arith.mulf %457, %523 : vector<8x128xf32>
    %525 = arith.addf %522, %524 : vector<8x128xf32>
    %526 = vector.broadcast %485 : vector<8x1xf32> to vector<8x128xf32>
    %527 = arith.mulf %462, %526 : vector<8x128xf32>
    %528 = vector.broadcast %497 : vector<8x1xf32> to vector<8x128xf32>
    %529 = arith.mulf %467, %528 : vector<8x128xf32>
    %530 = arith.addf %527, %529 : vector<8x128xf32>
    %531 = vector.broadcast %491 : vector<8x1xf32> to vector<8x128xf32>
    %532 = arith.mulf %462, %531 : vector<8x128xf32>
    %533 = vector.broadcast %503 : vector<8x1xf32> to vector<8x128xf32>
    %534 = arith.mulf %467, %533 : vector<8x128xf32>
    %535 = arith.addf %532, %534 : vector<8x128xf32>
    %536 = vector.broadcast %509 : vector<8x1xf32> to vector<8x128xf32>
    %537 = arith.mulf %452, %536 : vector<8x128xf32>
    %538 = vector.broadcast %515 : vector<8x1xf32> to vector<8x128xf32>
    %539 = arith.mulf %457, %538 : vector<8x128xf32>
    %540 = arith.addf %537, %539 : vector<8x128xf32>
    %541 = arith.addf %540, %473 : vector<8x128xf32>
    %542 = vector.broadcast %509 : vector<8x1xf32> to vector<8x128xf32>
    %543 = arith.mulf %462, %542 : vector<8x128xf32>
    %544 = vector.broadcast %515 : vector<8x1xf32> to vector<8x128xf32>
    %545 = arith.mulf %467, %544 : vector<8x128xf32>
    %546 = arith.addf %543, %545 : vector<8x128xf32>
    %547 = arith.addf %546, %479 : vector<8x128xf32>
    %548 = vector.broadcast %12 : vector<1x1xf32> to vector<8x128xf32>
    %549 = arith.mulf %520, %548 : vector<8x128xf32>
    %550 = vector.broadcast %13 : vector<1x1xf32> to vector<8x128xf32>
    %551 = arith.mulf %525, %550 : vector<8x128xf32>
    %552 = arith.addf %549, %551 : vector<8x128xf32>
    %553 = arith.addf %552, %541 : vector<8x128xf32>
    %554 = vector.broadcast %12 : vector<1x1xf32> to vector<8x128xf32>
    %555 = arith.mulf %530, %554 : vector<8x128xf32>
    %556 = vector.broadcast %13 : vector<1x1xf32> to vector<8x128xf32>
    %557 = arith.mulf %535, %556 : vector<8x128xf32>
    %558 = arith.addf %555, %557 : vector<8x128xf32>
    %559 = arith.addf %558, %547 : vector<8x128xf32>
    %c1_i32_151 = arith.constant 1 : i32
    %560 = tpu.dynamic_rotate %553 by %c1_i32_151 dim 1 : vector<8x128xf32>, i32 -> vector<8x128xf32>
    %c1_i32_152 = arith.constant 1 : i32
    %561 = tpu.dynamic_rotate %560 by %c1_i32_152 dim 0 : vector<8x128xf32>, i32 -> vector<8x128xf32>
    %c0_i32_153 = arith.constant 0 : i32
    %562 = vector.broadcast %c0_i32_153 : i32 to vector<8x128xi32>
    %563 = arith.cmpi eq, %17, %562 : vector<8x128xi32>
    %564 = arith.select %563, %561, %560 : vector<8x128xi1>, vector<8x128xf32>
    %c0_i32_154 = arith.constant 0 : i32
    %565 = vector.broadcast %c0_i32_154 : i32 to vector<8x128xi32>
    %566 = arith.cmpi eq, %17, %565 : vector<8x128xi32>
    %c0_i32_155 = arith.constant 0 : i32
    %567 = vector.broadcast %c0_i32_155 : i32 to vector<8x128xi32>
    %568 = arith.cmpi eq, %18, %567 : vector<8x128xi32>
    %569 = arith.andi %566, %568 : vector<8x128xi1>
    %570 = vector.shape_cast %12 : vector<1x1xf32> to vector<1x1xf32>
    %571 = vector.broadcast %570 : vector<1x1xf32> to vector<8x128xf32>
    %572 = arith.select %569, %571, %564 : vector<8x128xi1>, vector<8x128xf32>
    %c0_156 = arith.constant 0 : index
    %c0_157 = arith.constant 0 : index
    %573 = vector.load %arg3[%c0_156, %c0_157] : memref<40x128xf32, #tpu.memory_space<vmem>>, vector<8x128xf32>
    tpu.vector_store %arg3[%c0_156, %c0_157], %553 {strides = array<i32>} : memref<40x128xf32, #tpu.memory_space<vmem>>, vector<8x128xf32>,
    %c8_158 = arith.constant 8 : index
    %c0_159 = arith.constant 0 : index
    %574 = vector.load %arg3[%c8_158, %c0_159] : memref<40x128xf32, #tpu.memory_space<vmem>>, vector<8x128xf32>
    tpu.vector_store %arg3[%c8_158, %c0_159], %559 {strides = array<i32>} : memref<40x128xf32, #tpu.memory_space<vmem>>, vector<8x128xf32>,
    %575 = arith.mulf %5, %0 : f32
    %576 = vector.broadcast %575 : f32 to vector<8x128xf32>
    %577 = arith.mulf %576, %572 : vector<8x128xf32>
    %c16_160 = arith.constant 16 : index
    %c0_161 = arith.constant 0 : index
    %578 = vector.load %arg3[%c16_160, %c0_161] : memref<40x128xf32, #tpu.memory_space<vmem>>, vector<8x128xf32>
    tpu.vector_store %arg3[%c16_160, %c0_161], %577 {strides = array<i32>} : memref<40x128xf32, #tpu.memory_space<vmem>>, vector<8x128xf32>,
    %579 = vector.extract_strided_slice %553 {offsets = [7, 0], sizes = [1, 128], strides = [1, 1]} : vector<8x128xf32> to vector<1x128xf32>
    %c0_162 = arith.constant 0 : index
    %c0_163 = arith.constant 0 : index
    %580 = vector.load %arg4[%c0_162, %c0_163] : memref<8x128xf32, #tpu.memory_space<vmem>>, vector<1x128xf32>
    tpu.vector_store %arg4[%c0_162, %c0_163], %579 {strides = array<i32>} : memref<8x128xf32, #tpu.memory_space<vmem>>, vector<1x128xf32>,
    %581 = vector.extract_strided_slice %559 {offsets = [7, 0], sizes = [1, 128], strides = [1, 1]} : vector<8x128xf32> to vector<1x128xf32>
    %c1_164 = arith.constant 1 : index
    %c0_165 = arith.constant 0 : index
    %582 = vector.load %arg4[%c1_164, %c0_165] : memref<8x128xf32, #tpu.memory_space<vmem>>, vector<1x128xf32>
    tpu.vector_store %arg4[%c1_164, %c0_165], %581 {strides = array<i32>} : memref<8x128xf32, #tpu.memory_space<vmem>>, vector<1x128xf32>,
    return
  }
  func.func @transform_0(%arg0: i32) -> i32 {
    %c0_i32 = arith.constant 0 : i32
    %c0_i32_0 = arith.constant 0 : i32
    return %c0_i32 : i32
  }
  func.func @transform_1(%arg0: i32) -> (i32, i32) {
    %c0_i32 = arith.constant 0 : i32
    %c0_i32_0 = arith.constant 0 : i32
    return %arg0, %c0_i32 : i32, i32
  }
  func.func @transform_2(%arg0: i32) -> (i32, i32) {
    %c0_i32 = arith.constant 0 : i32
    %c0_i32_0 = arith.constant 0 : i32
    return %arg0, %c0_i32 : i32, i32
  }
}

</mosaic_0001>

<llo_original>
// kernel: tpu_custom_call.1
$region0: #{tpu_custom_call.1}
  #allocation0 [shape = 'u32[]', space=smem, size = 0x4, offset = 0x4, fixed_abs, tag = 'smem constant byte address 0x4 - core index']
  #allocation1 [shape = 'u32[144,128]{1,0:T(1,128)}', space=vmem, size = 0x12000, scoped, tag = 'internal scratch']
  #allocation2 [shape = 'f32[8,128]{1,0:T(8,128)}', space=vmem, size = 0x1000, scoped, tag = 'scratch operand']
  %s0 = inlined_call_operand.hbm [shape: f32[11], index: 0, kind: input, shape index: {}]
  %s1 = inlined_call_operand.hbm [shape: f32[24,128], index: 1, kind: input, shape index: {}]
  %s2 = inlined_call_operand.hbm [shape: f32[40,128], index: 2, kind: output, shape index: {}]
  %s3 = sld [smem:[#allocation0]]
  $region30: #{tpu_custom_call.1} parent=0
    _
  %s5 = ssub.s32 1, %s3
  %s6 = scalar_select 0, %s5, %s3
  $region1: #{tpu_custom_call.1} parent=0
    #allocation3 [shape = 'u8[512]{0}', space=smem, size = 0x200, scoped, tag = 'input window, operand 0, single buffered']
    #allocation4 [shape = 's32[1]{0}', space=sflag, size = 0x4, scoped, tag = 'scoped memory for tpu_custom_call.1']
    #allocation5 [shape = 's32[1]{0}', space=sflag, size = 0x4, scoped, tag = 'scoped memory for tpu_custom_call.1']
    #allocation6 [shape = 's32[1]{0}', space=sflag, size = 0x4, scoped, tag = 'scoped memory for tpu_custom_call.1']
    #allocation7 [shape = 'u8[12288]{0}', space=vmem, size = 0x3000, scoped, tag = 'input window, operand 1, single buffered']
    #allocation8 [shape = 'u8[20480]{0}', space=vmem, size = 0x5000, scoped, tag = 'output window, operand 0, single buffered']
    %7 = vsyncpa [#allocation6], 0
    %8 = vsyncpa [#allocation4], 0
    %9 = vsyncpa [#allocation5], 0
    // Predicated region
    $region2: #{tpu_custom_call.1} parent=1 // pred_check
      _
    $region3: #{tpu_custom_call.1} parent=1 // pred_check_branch
      %11 = sbr.rel (0) target = $region5
    $region4: #{tpu_custom_call.1} parent=1 // pred_region
      %s13 = ssub.s32 16, 16
      %14 = vsyncadd [#allocation6], %s13
      %17 = dma.hbm_to_smem %s0, 16, [#allocation3], [#allocation6]
    $region5: #{tpu_custom_call.1} parent=1 // pred_fallthru
      _
    // Predicated region
    $region6: #{tpu_custom_call.1} parent=1 // pred_check
      _
    $region7: #{tpu_custom_call.1} parent=1 // pred_check_branch
      %19 = sbr.rel (0) target = $region9
    $region8: #{tpu_custom_call.1} parent=1 // pred_region
      %s21 = ssub.s32 384, 384
      %22 = vsyncadd [#allocation4], %s21
      %s23 = sshll.u32 [#allocation7], 4
      %s24 = int_to_ptr.vmem [resolvable:$true] %s23
      %29 = dma.hbm_to_vmem [thread:$0]  %s1, 384, %s24, [#allocation4], 128, 128, 8
    $region9: #{tpu_custom_call.1} parent=1 // pred_fallthru
      _
    // Predicated region
    $region10: #{tpu_custom_call.1} parent=1 // pred_check
      _
    $region11: #{tpu_custom_call.1} parent=1 // pred_check_branch
      %31 = sbr.rel (0) target = $region13
    $region12: #{tpu_custom_call.1} parent=1 // pred_region
      %32 = dma.done [#allocation6], 16
    $region13: #{tpu_custom_call.1} parent=1 // pred_fallthru
      _
    // Predicated region
    $region14: #{tpu_custom_call.1} parent=1 // pred_check
      _
    $region15: #{tpu_custom_call.1} parent=1 // pred_check_branch
      %34 = sbr.rel (0) target = $region17
    $region16: #{tpu_custom_call.1} parent=1 // pred_region
      %35 = dma.done [#allocation4], 384
    $region17: #{tpu_custom_call.1} parent=1 // pred_fallthru
      _
    %36 = sfence
    %s37 = sld [smem:[#allocation3]]
    %s38 = sld [smem:[#allocation3 + $0x1]]
    %s39 = sld [smem:[#allocation3 + $0x2]]
    %s40 = sld [smem:[#allocation3 + $0x3]]
    %s41 = sld [smem:[#allocation3 + $0x4]]
    %s42 = sld [smem:[#allocation3 + $0x5]]
    %s43 = sld [smem:[#allocation3 + $0x6]]
    %s44 = sld [smem:[#allocation3 + $0x7]]
    %s45 = sld [smem:[#allocation3 + $0x8]]
    %p46 = scmp.eq.s32.totalorder 0, 0
    // Predicated region
    $region18: #{tpu_custom_call.1} parent=1 // pred_check
      %p47 = pneg %p46
    $region19: #{tpu_custom_call.1} parent=1 // pred_check_branch
      %49 = sbr.rel (%p47) target = $region21
    $region20: #{tpu_custom_call.1} parent=1 // pred_region
      %s50 = sld [smem:[#allocation3 + $0x9]]
      %v51 = vstv %s50
      %52 = vst [vmem:[#allocation2] sm:$0x1] %v51
      %s53 = sld [smem:[#allocation3 + $0xa]]
      %v54 = vstv %s53
      %55 = vst [vmem:[#allocation2 + $0x1] sm:$0x1] %v54
    $region21: #{tpu_custom_call.1} parent=1 // pred_fallthru
      _
    %v56 = vld [vmem:[#allocation2] sm:$0x1]
    %v57 = vld [vmem:[#allocation2 + $0x1] sm:$0x1]
    %v58 = vld [vmem:[#allocation7] sm:$0xff]
    %v59 = vld [vmem:[#allocation7 + $0x8] sm:$0xff]
    %v60 = vld [vmem:[#allocation7 + $0x10] sm:$0xff]
    %v61 = vlaneseq
    %v62 = vand.u32 %v61, 127
    %v63 = vlaneseq
    %v64 = vshrl.u32 %v63, 7
    %s65 = smul.u32 0, 1024
    %v66 = vmul.u32 %v64, 128
    %v67 = vstv %s65
    %v68 = vadd.s32 %v67, %v66
    %v69 = vadd.s32 %v68, %v62
    %v70 = vcvt.s32.f32 %v69
    %v71 = vadd.f32 %v70, 1.0
    %v72 = vstv %s43
    %v73 = vmul.f32 %v71, %v72
    %v74 = vmul.f32 %v73, 1.442695
    %v75 = vpow.pop %v74
    %v76 = vstv %s44
    %v77 = vmul.f32 %v76, %v75
    %v78 = vstv %s45
    %v79 = vmul.f32 %v78, %v75
    %80 = vst [vmem:[#allocation8 + $0x18] sm:$0xff] %v77
    %81 = vst [vmem:[#allocation8 + $0x20] sm:$0xff] %v79
    %s82 = smul.f32 %s37, %s38
    %s83 = sadd.f32 %s82, 1.0
    %s84 = smul.f32 %s37, %s42
    %v85 = vstv %s84
    %v86 = vmul.f32 %v85, %v59
    %v87 = vstv %s83
    %v88 = vsub.f32 %v87, %v86
    %s89 = smul.f32 %s37, %s39
    %v90 = vstv %s89
    %s91 = smul.f32 %s37, %s40
    %v92 = vmul.f32 %v85, %v60
    %v93 = vstv %s91
    %v94 = vsub.f32 %v93, %v92
    %s95 = smul.f32 %s37, %s41
    %s96 = sadd.f32 %s95, 1.0
    %v97 = vstv %s96
    %v98 = vmul.f32 %v59, %v58
    %v99 = vstv %s37
    %v100 = vmul.f32 %v77, %v99
    %v101 = vadd.f32 %v98, %v100
    %v102 = vmul.f32 %v60, %v58
    %v103 = vmul.f32 %v79, %v99
    %v104 = vadd.f32 %v102, %v103
    %vm105 = vcmp.lt.s32.totalorder %v62, 1
    %106 = vrot.lane.b32.xlu0 %v88, 1
    %v107 = vpop.permute.xlu0 %106
    %v108 = vsel %vm105, 1.0, %v107
    %109 = vrot.lane.b32.xlu0 %v90, 1
    %v110 = vpop.permute.xlu0 %109
    %v111 = vsel %vm105, 0.0, %v110
    %112 = vrot.lane.b32.xlu0 %v94, 1
    %v113 = vpop.permute.xlu0 %112
    %v114 = vsel %vm105, 0.0, %v113
    %115 = vrot.lane.b32.xlu0 %v97, 1
    %v116 = vpop.permute.xlu0 %115
    %v117 = vsel %vm105, 1.0, %v116
    %118 = vrot.lane.b32.xlu0 %v101, 1
    %v119 = vpop.permute.xlu0 %118
    %v120 = vsel %vm105, 0.0, %v119
    %121 = vrot.lane.b32.xlu0 %v104, 1
    %v122 = vpop.permute.xlu0 %121
    %v123 = vsel %vm105, 0.0, %v122
    %v124 = vmul.f32 %v88, %v108
    %v125 = vmul.f32 %v90, %v114
    %v126 = vadd.f32 %v124, %v125
    %v127 = vmul.f32 %v88, %v111
    %v128 = vmul.f32 %v90, %v117
    %v129 = vadd.f32 %v127, %v128
    %v130 = vmul.f32 %v94, %v108
    %v131 = vmul.f32 %v97, %v114
    %v132 = vadd.f32 %v130, %v131
    %v133 = vmul.f32 %v94, %v111
    %v134 = vmul.f32 %v97, %v117
    %v135 = vadd.f32 %v133, %v134
    %v136 = vmul.f32 %v88, %v120
    %v137 = vmul.f32 %v90, %v123
    %v138 = vadd.f32 %v136, %v137
    %v139 = vadd.f32 %v138, %v101
    %v140 = vmul.f32 %v94, %v120
    %v141 = vmul.f32 %v97, %v123
    %v142 = vadd.f32 %v140, %v141
    %v143 = vadd.f32 %v142, %v104
    %vm144 = vcmp.lt.s32.totalorder %v62, 2
    %145 = vrot.lane.b32.xlu0 %v126, 2
    %v146 = vpop.permute.xlu0 %145
    %v147 = vsel %vm144, 1.0, %v146
    %148 = vrot.lane.b32.xlu0 %v129, 2
    %v149 = vpop.permute.xlu0 %148
    %v150 = vsel %vm144, 0.0, %v149
    %151 = vrot.lane.b32.xlu0 %v132, 2
    %v152 = vpop.permute.xlu0 %151
    %v153 = vsel %vm144, 0.0, %v152
    %154 = vrot.lane.b32.xlu0 %v135, 2
    %v155 = vpop.permute.xlu0 %154
    %v156 = vsel %vm144, 1.0, %v155
    %157 = vrot.lane.b32.xlu0 %v139, 2
    %v158 = vpop.permute.xlu0 %157
    %v159 = vsel %vm144, 0.0, %v158
    %160 = vrot.lane.b32.xlu0 %v143, 2
    %v161 = vpop.permute.xlu0 %160
    %v162 = vsel %vm144, 0.0, %v161
    %v163 = vmul.f32 %v126, %v147
    %v164 = vmul.f32 %v129, %v153
    %v165 = vadd.f32 %v163, %v164
    %v166 = vmul.f32 %v126, %v150
    %v167 = vmul.f32 %v129, %v156
    %v168 = vadd.f32 %v166, %v167
    %v169 = vmul.f32 %v132, %v147
    %v170 = vmul.f32 %v135, %v153
    %v171 = vadd.f32 %v169, %v170
    %v172 = vmul.f32 %v132, %v150
    %v173 = vmul.f32 %v135, %v156
    %v174 = vadd.f32 %v172, %v173
    %v175 = vmul.f32 %v126, %v159
    %v176 = vmul.f32 %v129, %v162
    %v177 = vadd.f32 %v175, %v176
    %v178 = vadd.f32 %v177, %v139
    %v179 = vmul.f32 %v132, %v159
    %v180 = vmul.f32 %v135, %v162
    %v181 = vadd.f32 %v179, %v180
    %v182 = vadd.f32 %v181, %v143
    %vm183 = vcmp.lt.s32.totalorder %v62, 4
    %184 = vrot.lane.b32.xlu0 %v165, 4
    %v185 = vpop.permute.xlu0 %184
    %v186 = vsel %vm183, 1.0, %v185
    %187 = vrot.lane.b32.xlu0 %v168, 4
    %v188 = vpop.permute.xlu0 %187
    %v189 = vsel %vm183, 0.0, %v188
    %190 = vrot.lane.b32.xlu0 %v171, 4
    %v191 = vpop.permute.xlu0 %190
    %v192 = vsel %vm183, 0.0, %v191
    %193 = vrot.lane.b32.xlu0 %v174, 4
    %v194 = vpop.permute.xlu0 %193
    %v195 = vsel %vm183, 1.0, %v194
    %196 = vrot.lane.b32.xlu0 %v178, 4
    %v197 = vpop.permute.xlu0 %196
    %v198 = vsel %vm183, 0.0, %v197
    %199 = vrot.lane.b32.xlu0 %v182, 4
    %v200 = vpop.permute.xlu0 %199
    %v201 = vsel %vm183, 0.0, %v200
    %v202 = vmul.f32 %v165, %v186
    %v203 = vmul.f32 %v168, %v192
    %v204 = vadd.f32 %v202, %v203
    %v205 = vmul.f32 %v165, %v189
    %v206 = vmul.f32 %v168, %v195
    %v207 = vadd.f32 %v205, %v206
    %v208 = vmul.f32 %v171, %v186
    %v209 = vmul.f32 %v174, %v192
    %v210 = vadd.f32 %v208, %v209
    %v211 = vmul.f32 %v171, %v189
    %v212 = vmul.f32 %v174, %v195
    %v213 = vadd.f32 %v211, %v212
    %v214 = vmul.f32 %v165, %v198
    %v215 = vmul.f32 %v168, %v201
    %v216 = vadd.f32 %v214, %v215
    %v217 = vadd.f32 %v216, %v178
    %v218 = vmul.f32 %v171, %v198
    %v219 = vmul.f32 %v174, %v201
    %v220 = vadd.f32 %v218, %v219
    %v221 = vadd.f32 %v220, %v182
    %vm222 = vcmp.lt.s32.totalorder %v62, 8
    %223 = vrot.lane.b32.xlu0 %v204, 8
    %v224 = vpop.permute.xlu0 %223
    %v225 = vsel %vm222, 1.0, %v224
    %226 = vrot.lane.b32.xlu0 %v207, 8
    %v227 = vpop.permute.xlu0 %226
    %v228 = vsel %vm222, 0.0, %v227
    %229 = vrot.lane.b32.xlu0 %v210, 8
    %v230 = vpop.permute.xlu0 %229
    %v231 = vsel %vm222, 0.0, %v230
    %232 = vrot.lane.b32.xlu0 %v213, 8
    %v233 = vpop.permute.xlu0 %232
    %v234 = vsel %vm222, 1.0, %v233
    %235 = vrot.lane.b32.xlu0 %v217, 8
    %v236 = vpop.permute.xlu0 %235
    %v237 = vsel %vm222, 0.0, %v236
    %238 = vrot.lane.b32.xlu0 %v221, 8
    %v239 = vpop.permute.xlu0 %238
    %v240 = vsel %vm222, 0.0, %v239
    %v241 = vmul.f32 %v204, %v225
    %v242 = vmul.f32 %v207, %v231
    %v243 = vadd.f32 %v241, %v242
    %v244 = vmul.f32 %v204, %v228
    %v245 = vmul.f32 %v207, %v234
    %v246 = vadd.f32 %v244, %v245
    %v247 = vmul.f32 %v210, %v225
    %v248 = vmul.f32 %v213, %v231
    %v249 = vadd.f32 %v247, %v248
    %v250 = vmul.f32 %v210, %v228
    %v251 = vmul.f32 %v213, %v234
    %v252 = vadd.f32 %v250, %v251
    %v253 = vmul.f32 %v204, %v237
    %v254 = vmul.f32 %v207, %v240
    %v255 = vadd.f32 %v253, %v254
    %v256 = vadd.f32 %v255, %v217
    %v257 = vmul.f32 %v210, %v237
    %v258 = vmul.f32 %v213, %v240
    %v259 = vadd.f32 %v257, %v258
    %v260 = vadd.f32 %v259, %v221
    %vm261 = vcmp.lt.s32.totalorder %v62, 16
    %262 = vrot.lane.b32.xlu0 %v243, 16
    %v263 = vpop.permute.xlu0 %262
    %v264 = vsel %vm261, 1.0, %v263
    %265 = vrot.lane.b32.xlu0 %v246, 16
    %v266 = vpop.permute.xlu0 %265
    %v267 = vsel %vm261, 0.0, %v266
    %268 = vrot.lane.b32.xlu0 %v249, 16
    %v269 = vpop.permute.xlu0 %268
    %v270 = vsel %vm261, 0.0, %v269
    %271 = vrot.lane.b32.xlu0 %v252, 16
    %v272 = vpop.permute.xlu0 %271
    %v273 = vsel %vm261, 1.0, %v272
    %274 = vrot.lane.b32.xlu0 %v256, 16
    %v275 = vpop.permute.xlu0 %274
    %v276 = vsel %vm261, 0.0, %v275
    %277 = vrot.lane.b32.xlu0 %v260, 16
    %v278 = vpop.permute.xlu0 %277
    %v279 = vsel %vm261, 0.0, %v278
    %v280 = vmul.f32 %v243, %v264
    %v281 = vmul.f32 %v246, %v270
    %v282 = vadd.f32 %v280, %v281
    %v283 = vmul.f32 %v243, %v267
    %v284 = vmul.f32 %v246, %v273
    %v285 = vadd.f32 %v283, %v284
    %v286 = vmul.f32 %v249, %v264
    %v287 = vmul.f32 %v252, %v270
    %v288 = vadd.f32 %v286, %v287
    %v289 = vmul.f32 %v249, %v267
    %v290 = vmul.f32 %v252, %v273
    %v291 = vadd.f32 %v289, %v290
    %v292 = vmul.f32 %v243, %v276
    %v293 = vmul.f32 %v246, %v279
    %v294 = vadd.f32 %v292, %v293
    %v295 = vadd.f32 %v294, %v256
    %v296 = vmul.f32 %v249, %v276
    %v297 = vmul.f32 %v252, %v279
    %v298 = vadd.f32 %v296, %v297
    %v299 = vadd.f32 %v298, %v260
    %vm300 = vcmp.lt.s32.totalorder %v62, 32
    %301 = vrot.lane.b32.xlu0 %v282, 32
    %v302 = vpop.permute.xlu0 %301
    %v303 = vsel %vm300, 1.0, %v302
    %304 = vrot.lane.b32.xlu0 %v285, 32
    %v305 = vpop.permute.xlu0 %304
    %v306 = vsel %vm300, 0.0, %v305
    %307 = vrot.lane.b32.xlu0 %v288, 32
    %v308 = vpop.permute.xlu0 %307
    %v309 = vsel %vm300, 0.0, %v308
    %310 = vrot.lane.b32.xlu0 %v291, 32
    %v311 = vpop.permute.xlu0 %310
    %v312 = vsel %vm300, 1.0, %v311
    %313 = vrot.lane.b32.xlu0 %v295, 32
    %v314 = vpop.permute.xlu0 %313
    %v315 = vsel %vm300, 0.0, %v314
    %316 = vrot.lane.b32.xlu0 %v299, 32
    %v317 = vpop.permute.xlu0 %316
    %v318 = vsel %vm300, 0.0, %v317
    %v319 = vmul.f32 %v282, %v303
    %v320 = vmul.f32 %v285, %v309
    %v321 = vadd.f32 %v319, %v320
    %v322 = vmul.f32 %v282, %v306
    %v323 = vmul.f32 %v285, %v312
    %v324 = vadd.f32 %v322, %v323
    %v325 = vmul.f32 %v288, %v303
    %v326 = vmul.f32 %v291, %v309
    %v327 = vadd.f32 %v325, %v326
    %v328 = vmul.f32 %v288, %v306
    %v329 = vmul.f32 %v291, %v312
    %v330 = vadd.f32 %v328, %v329
    %v331 = vmul.f32 %v282, %v315
    %v332 = vmul.f32 %v285, %v318
    %v333 = vadd.f32 %v331, %v332
    %v334 = vadd.f32 %v333, %v295
    %v335 = vmul.f32 %v288, %v315
    %v336 = vmul.f32 %v291, %v318
    %v337 = vadd.f32 %v335, %v336
    %v338 = vadd.f32 %v337, %v299
    %vm339 = vcmp.lt.s32.totalorder %v62, 64
    %340 = vrot.lane.b32.xlu0 %v321, 64
    %v341 = vpop.permute.xlu0 %340
    %v342 = vsel %vm339, 1.0, %v341
    %343 = vrot.lane.b32.xlu0 %v324, 64
    %v344 = vpop.permute.xlu0 %343
    %v345 = vsel %vm339, 0.0, %v344
    %346 = vrot.lane.b32.xlu0 %v327, 64
    %v347 = vpop.permute.xlu0 %346
    %v348 = vsel %vm339, 0.0, %v347
    %349 = vrot.lane.b32.xlu0 %v330, 64
    %v350 = vpop.permute.xlu0 %349
    %v351 = vsel %vm339, 1.0, %v350
    %352 = vrot.lane.b32.xlu0 %v334, 64
    %v353 = vpop.permute.xlu0 %352
    %v354 = vsel %vm339, 0.0, %v353
    %355 = vrot.lane.b32.xlu0 %v338, 64
    %v356 = vpop.permute.xlu0 %355
    %v357 = vsel %vm339, 0.0, %v356
    %v358 = vmul.f32 %v321, %v342
    %v359 = vmul.f32 %v324, %v348
    %v360 = vadd.f32 %v358, %v359
    %v361 = vmul.f32 %v321, %v345
    %v362 = vmul.f32 %v324, %v351
    %v363 = vadd.f32 %v361, %v362
    %v364 = vmul.f32 %v327, %v342
    %v365 = vmul.f32 %v330, %v348
    %v366 = vadd.f32 %v364, %v365
    %v367 = vmul.f32 %v327, %v345
    %v368 = vmul.f32 %v330, %v351
    %v369 = vadd.f32 %v367, %v368
    %v370 = vmul.f32 %v321, %v354
    %v371 = vmul.f32 %v324, %v357
    %v372 = vadd.f32 %v370, %v371
    %v373 = vadd.f32 %v372, %v334
    %v374 = vmul.f32 %v327, %v354
    %v375 = vmul.f32 %v330, %v357
    %v376 = vadd.f32 %v374, %v375
    %v377 = vadd.f32 %v376, %v338
    %v378 = vrot.slane %v360, 7
    %vm379 = vcmp.lt.s32.totalorder %v64, 1
    %v380 = vsel %vm379, 1.0, %v378
    %v381 = vrot.slane %v363, 7
    %v382 = vsel %vm379, 0.0, %v381
    %v383 = vrot.slane %v366, 7
    %v384 = vsel %vm379, 0.0, %v383
    %v385 = vrot.slane %v369, 7
    %v386 = vsel %vm379, 1.0, %v385
    %v387 = vrot.slane %v373, 7
    %v388 = vsel %vm379, 0.0, %v387
    %v389 = vrot.slane %v377, 7
    %v390 = vsel %vm379, 0.0, %v389
    %392 = vset.pattern.permute.xlu0 127
    %393 = vperm.xlu0 %392, %v380
    %v394 = vpop.permute.xlu0 %393
    %v396 = vmul.f32 %v360, %v394
    %398 = vset.pattern.permute.xlu0 127
    %399 = vperm.xlu0 %398, %v384
    %v400 = vpop.permute.xlu0 %399
    %v402 = vmul.f32 %v363, %v400
    %v403 = vadd.f32 %v396, %v402
    %405 = vset.pattern.permute.xlu0 127
    %406 = vperm.xlu0 %405, %v382
    %v407 = vpop.permute.xlu0 %406
    %v409 = vmul.f32 %v360, %v407
    %411 = vset.pattern.permute.xlu0 127
    %412 = vperm.xlu0 %411, %v386
    %v413 = vpop.permute.xlu0 %412
    %v415 = vmul.f32 %v363, %v413
    %v416 = vadd.f32 %v409, %v415
    %v417 = vmul.f32 %v366, %v394
    %v418 = vmul.f32 %v369, %v400
    %v419 = vadd.f32 %v417, %v418
    %v420 = vmul.f32 %v366, %v407
    %v421 = vmul.f32 %v369, %v413
    %v422 = vadd.f32 %v420, %v421
    %424 = vset.pattern.permute.xlu0 127
    %425 = vperm.xlu0 %424, %v388
    %v426 = vpop.permute.xlu0 %425
    %v428 = vmul.f32 %v360, %v426
    %430 = vset.pattern.permute.xlu0 127
    %431 = vperm.xlu0 %430, %v390
    %v432 = vpop.permute.xlu0 %431
    %v434 = vmul.f32 %v363, %v432
    %v435 = vadd.f32 %v428, %v434
    %v436 = vadd.f32 %v435, %v373
    %v437 = vmul.f32 %v366, %v426
    %v438 = vmul.f32 %v369, %v432
    %v439 = vadd.f32 %v437, %v438
    %v440 = vadd.f32 %v439, %v377
    %v441 = vrot.slane %v403, 6
    %vm442 = vcmp.lt.s32.totalorder %v64, 2
    %v443 = vsel %vm442, 1.0, %v441
    %v444 = vrot.slane %v416, 6
    %v445 = vsel %vm442, 0.0, %v444
    %v446 = vrot.slane %v419, 6
    %v447 = vsel %vm442, 0.0, %v446
    %v448 = vrot.slane %v422, 6
    %v449 = vsel %vm442, 1.0, %v448
    %v450 = vrot.slane %v436, 6
    %v451 = vsel %vm442, 0.0, %v450
    %v452 = vrot.slane %v440, 6
    %v453 = vsel %vm442, 0.0, %v452
    %455 = vset.pattern.permute.xlu0 127
    %456 = vperm.xlu0 %455, %v443
    %v457 = vpop.permute.xlu0 %456
    %v459 = vmul.f32 %v403, %v457
    %461 = vset.pattern.permute.xlu0 127
    %462 = vperm.xlu0 %461, %v447
    %v463 = vpop.permute.xlu0 %462
    %v465 = vmul.f32 %v416, %v463
    %v466 = vadd.f32 %v459, %v465
    %468 = vset.pattern.permute.xlu0 127
    %469 = vperm.xlu0 %468, %v445
    %v470 = vpop.permute.xlu0 %469
    %v472 = vmul.f32 %v403, %v470
    %474 = vset.pattern.permute.xlu0 127
    %475 = vperm.xlu0 %474, %v449
    %v476 = vpop.permute.xlu0 %475
    %v478 = vmul.f32 %v416, %v476
    %v479 = vadd.f32 %v472, %v478
    %v480 = vmul.f32 %v419, %v457
    %v481 = vmul.f32 %v422, %v463
    %v482 = vadd.f32 %v480, %v481
    %v483 = vmul.f32 %v419, %v470
    %v484 = vmul.f32 %v422, %v476
    %v485 = vadd.f32 %v483, %v484
    %487 = vset.pattern.permute.xlu0 127
    %488 = vperm.xlu0 %487, %v451
    %v489 = vpop.permute.xlu0 %488
    %v491 = vmul.f32 %v403, %v489
    %493 = vset.pattern.permute.xlu0 127
    %494 = vperm.xlu0 %493, %v453
    %v495 = vpop.permute.xlu0 %494
    %v497 = vmul.f32 %v416, %v495
    %v498 = vadd.f32 %v491, %v497
    %v499 = vadd.f32 %v498, %v436
    %v500 = vmul.f32 %v419, %v489
    %v501 = vmul.f32 %v422, %v495
    %v502 = vadd.f32 %v500, %v501
    %v503 = vadd.f32 %v502, %v440
    %v504 = vrot.slane %v466, 4
    %vm505 = vcmp.lt.s32.totalorder %v64, 4
    %v506 = vsel %vm505, 1.0, %v504
    %v507 = vrot.slane %v479, 4
    %v508 = vsel %vm505, 0.0, %v507
    %v509 = vrot.slane %v482, 4
    %v510 = vsel %vm505, 0.0, %v509
    %v511 = vrot.slane %v485, 4
    %v512 = vsel %vm505, 1.0, %v511
    %v513 = vrot.slane %v499, 4
    %v514 = vsel %vm505, 0.0, %v513
    %v515 = vrot.slane %v503, 4
    %v516 = vsel %vm505, 0.0, %v515
    %518 = vset.pattern.permute.xlu0 127
    %519 = vperm.xlu0 %518, %v506
    %v520 = vpop.permute.xlu0 %519
    %v522 = vmul.f32 %v466, %v520
    %524 = vset.pattern.permute.xlu0 127
    %525 = vperm.xlu0 %524, %v510
    %v526 = vpop.permute.xlu0 %525
    %v528 = vmul.f32 %v479, %v526
    %v529 = vadd.f32 %v522, %v528
    %531 = vset.pattern.permute.xlu0 127
    %532 = vperm.xlu0 %531, %v508
    %v533 = vpop.permute.xlu0 %532
    %v535 = vmul.f32 %v466, %v533
    %537 = vset.pattern.permute.xlu0 127
    %538 = vperm.xlu0 %537, %v512
    %v539 = vpop.permute.xlu0 %538
    %v541 = vmul.f32 %v479, %v539
    %v542 = vadd.f32 %v535, %v541
    %v543 = vmul.f32 %v482, %v520
    %v544 = vmul.f32 %v485, %v526
    %v545 = vadd.f32 %v543, %v544
    %v546 = vmul.f32 %v482, %v533
    %v547 = vmul.f32 %v485, %v539
    %v548 = vadd.f32 %v546, %v547
    %550 = vset.pattern.permute.xlu0 127
    %551 = vperm.xlu0 %550, %v514
    %v552 = vpop.permute.xlu0 %551
    %v554 = vmul.f32 %v466, %v552
    %556 = vset.pattern.permute.xlu0 127
    %557 = vperm.xlu0 %556, %v516
    %v558 = vpop.permute.xlu0 %557
    %v560 = vmul.f32 %v479, %v558
    %v561 = vadd.f32 %v554, %v560
    %v562 = vadd.f32 %v561, %v499
    %v563 = vmul.f32 %v482, %v552
    %v564 = vmul.f32 %v485, %v558
    %v565 = vadd.f32 %v563, %v564
    %v566 = vadd.f32 %v565, %v503
    %568 = vrot.lane.b32.xlu0 %v56, 1
    %v569 = vpop.permute.xlu0 %568
    %s570 = vtos %v569
    %v571 = vstv %s570
    %v573 = vmul.f32 %v529, %v571
    %575 = vrot.lane.b32.xlu0 %v57, 1
    %v576 = vpop.permute.xlu0 %575
    %s577 = vtos %v576
    %v578 = vstv %s577
    %v580 = vmul.f32 %v542, %v578
    %v581 = vadd.f32 %v573, %v580
    %v582 = vadd.f32 %v581, %v562
    %v583 = vmul.f32 %v545, %v571
    %v584 = vmul.f32 %v548, %v578
    %v585 = vadd.f32 %v583, %v584
    %v586 = vadd.f32 %v585, %v566
    %587 = vrot.lane.b32.xlu0 %v582, 1
    %v588 = vpop.permute.xlu0 %587
    %v589 = vrot.slane %v588, 7
    %vm590 = vcmp.eq.s32.totalorder %v62, 0
    %v591 = vsel %vm590, %v589, %v588
    %vm592 = vcmp.eq.s32.totalorder %v64, 0
    %vm593 = vmand %vm590, %vm592
    %v594 = vsel %vm593, %v571, %v591
    %595 = vst [vmem:[#allocation8] sm:$0xff] %v582
    %596 = vst [vmem:[#allocation8 + $0x8] sm:$0xff] %v586
    %v597 = vmul.f32 %v85, %v594
    %598 = vst [vmem:[#allocation8 + $0x10] sm:$0xff] %v597
    %599 = vst [vmem:[#allocation2 - $0x7] sm:$0x80] %v582
    %600 = vst [vmem:[#allocation2 - $0x6] sm:$0x80] %v586
    // Predicated region
    $region22: #{tpu_custom_call.1} parent=1 // pred_check
      _
    $region23: #{tpu_custom_call.1} parent=1 // pred_check_branch
      %602 = sbr.rel (0) target = $region25
    $region24: #{tpu_custom_call.1} parent=1 // pred_region
      %s604 = ssub.s32 640, 640
      %605 = vsyncadd [#allocation5], %s604
      %s606 = sshll.u32 [#allocation8], 4
      %s607 = int_to_ptr.vmem [resolvable:$true] %s606
      %612 = dma.vmem_to_hbm [thread:$0]  %s607, 640, %s2, [#allocation5], 128, 128, 8
    $region25: #{tpu_custom_call.1} parent=1 // pred_fallthru
      _
    // Predicated region
    $region26: #{tpu_custom_call.1} parent=1 // pred_check
      _
    $region27: #{tpu_custom_call.1} parent=1 // pred_check_branch
      %614 = sbr.rel (0) target = $region29
    $region28: #{tpu_custom_call.1} parent=1 // pred_region
      %615 = dma.done [#allocation5], 640
    $region29: #{tpu_custom_call.1} parent=1 // pred_fallthru
      _
    %616 = vsyncpa [#allocation4], 1
    %617 = vsyncpa [#allocation5], 1
    %618 = vsyncpa [#allocation6], 1

</llo_original>
